<compile_context>
chip_gen: v6e
topology: v6e:2x2x1
jax: 0.10.0
libtpu: 0.0.40
codegen_flags: <defaults>
</compile_context>

<pallas_src>
import functools
import math

import jax
import jax.numpy as jnp
from jax import lax
from jax.experimental import pallas as pl
from jax.experimental.pallas import tpu as pltpu  # noqa: F401  (TPU backend)

# ----------------------------- config -----------------------------
VOCAB = 256
HIDDEN = 128
N_LAYERS = 2
N_HEADS = 2
N_KV_HEADS = 1
HEAD_DIM = 64
INTERMEDIATE = 256
RMS_EPS = 1e-6
ROPE_THETA = 10000.0
SEQ = 8

Q_SIZE = N_HEADS * HEAD_DIM
KV_SIZE = N_KV_HEADS * HEAD_DIM
SCALE = HEAD_DIM ** -0.5
NORMALIZER = HIDDEN ** 0.5
NORM_ROWS = 8                    # 2*N_LAYERS + 1 padded to a full sublane tile
PARAM_DTYPE = jnp.bfloat16       # weights stored / DMA'd in bf16
ACT_DTYPE = jnp.float32          # norm / softmax / GeGLU math stays f32


# ----------------------------- fused kernel -----------------------------
def _gemma_fused_kernel(
    ids_ref,      # (T, 1)   int32   token ids
    embed_ref,    # (VOCAB, HIDDEN)  bf16
    rope_ref,     # (T, 2*HEAD_DIM)  f32  : [cos|cos | -sin|sin]
    qkv_w_ref,    # (L, HIDDEN, Q+2*KV)        bf16
    o_w_ref,      # (L, Q_SIZE, HIDDEN)        bf16
    gu_w_ref,     # (L, HIDDEN, 2*INTERMEDIATE) bf16
    down_w_ref,   # (L, INTERMEDIATE, HIDDEN)  bf16
    norms_ref,    # (NORM_ROWS, HIDDEN) f32  rows: in0, post0, in1, post1, final, pad
    out_ref,      # (T, HIDDEN) f32
    *,
    eps,
    scale,
    normalizer,
    vocab,
    n_layers,
    n_heads,
    n_kv_heads,
    head_dim,
    intermediate,
):
    t = out_ref.shape[0]
    q_size = n_heads * head_dim
    kv_size = n_kv_heads * head_dim
    group = n_heads // n_kv_heads
    d2 = head_dim // 2

    # ---- embedding gather fused in-kernel (exact one-hot select on the MXU) ----
    ids = ids_ref[...]                                                  # (T, 1) i32
    vocab_iota = lax.broadcasted_iota(jnp.int32, (t, vocab), 1)
    onehot = jnp.where(vocab_iota == ids, 1.0, 0.0).astype(jnp.bfloat16)
    h = jnp.dot(onehot, embed_ref[...],
                preferred_element_type=jnp.float32) * normalizer        # (T, H) f32
    residual = h

    rope = rope_ref[...]
    cos_full = rope[:, :head_dim]         # [cos | cos]
    sin_sign = rope[:, head_dim:]         # [-sin | sin]

    def rmsnorm(x, w):
        # GemmaRMSNorm: f32 math, effective scale = (1 + w)
        var = jnp.mean(x * x, axis=-1, keepdims=True)
        return x * lax.rsqrt(var + eps) * (1.0 + w)

    def rope_rotate(xh):
        # neox rotate-half via swapped halves + sign-packed sin table:
        #   rot(x) = x * [cos|cos] + [x2|x1] * [-sin|sin]
        # Produces a lane-dense (T, head_dim) tensor -> one QK^T dot per head.
        swapped = jnp.concatenate([xh[:, d2:], xh[:, :d2]], axis=-1)
        return xh * cos_full + swapped * sin_sign

    # causal mask (scores stay f32, so -1e30 is safe)
    row = lax.broadcasted_iota(jnp.int32, (t, t), 0)
    col = lax.broadcasted_iota(jnp.int32, (t, t), 1)
    causal = col <= row
    contract_last = (((1,), (1,)), ((), ()))   # q . k^T without materializing k^T

    for li in range(n_layers):
        w_in = norms_ref[2 * li:2 * li + 1, :]
        w_post = norms_ref[2 * li + 1:2 * li + 2, :]

        # ---- input layernorm (fused residual add after layer 0) ----
        if li == 0:
            x_norm = rmsnorm(h, w_in)
        else:
            x = h + residual
            residual = x
            x_norm = rmsnorm(x, w_in)

        # ---- self attention (weight refs indexed at point of use) ----
        qkv = jnp.dot(x_norm.astype(jnp.bfloat16), qkv_w_ref[li],
                      preferred_element_type=jnp.float32)

        # RoPE(K) once per KV head (not once per Q head)
        k_rot, v_heads = [], []
        for kh in range(n_kv_heads):
            koff = q_size + kh * head_dim
            voff = q_size + kv_size + kh * head_dim
            k_rot.append(rope_rotate(qkv[:, koff:koff + head_dim]))
            v_heads.append(qkv[:, voff:voff + head_dim].astype(jnp.bfloat16))

        pv_heads = []
        for hh in range(n_heads):
            kh = hh // group
            q_rot = rope_rotate(qkv[:, hh * head_dim:(hh + 1) * head_dim])
            s = lax.dot_general(q_rot, k_rot[kh], contract_last,
                                preferred_element_type=jnp.float32) * scale
            s = jnp.where(causal, s, -1e30)
            m = jnp.max(s, axis=-1, keepdims=True)
            p = jnp.exp(s - m)
            denom = jnp.sum(p, axis=-1, keepdims=True)
            p = p * pl.reciprocal(denom, approx=True)
            pv_heads.append(jnp.dot(p.astype(jnp.bfloat16), v_heads[kh],
                                    preferred_element_type=jnp.float32))   # (T, hd)

        # Fused o_proj: pack heads into one lane-dense (T, Q_SIZE) slab, ONE dot.
        pv_all = jnp.concatenate(pv_heads, axis=-1)
        attn_o = jnp.dot(pv_all.astype(jnp.bfloat16), o_w_ref[li],
                         preferred_element_type=jnp.float32)               # (T, H)

        # ---- post-attention layernorm (fused residual add) ----
        x = attn_o + residual
        residual = x
        x_norm = rmsnorm(x, w_post)

        # ---- MLP with fused GeGLU (gelu_pytorch_tanh(gate) * up) ----
        gate_up = jnp.dot(x_norm.astype(jnp.bfloat16), gu_w_ref[li],
                          preferred_element_type=jnp.float32)
        gate = gate_up[:, :intermediate]
        up = gate_up[:, intermediate:]
        c = math.sqrt(2.0 / math.pi)
        g = 0.5 * gate * (1.0 + jnp.tanh(c * (gate + 0.044715 * gate * gate * gate)))
        h = jnp.dot((g * up).astype(jnp.bfloat16), down_w_ref[li],
                    preferred_element_type=jnp.float32)

    # ---- final norm (fused residual add) ----
    x = h + residual
    w_final = norms_ref[2 * n_layers:2 * n_layers + 1, :]
    out_ref[...] = rmsnorm(x, w_final).astype(out_ref.dtype)


# ----------------------------- wrappers -----------------------------
def _rope_table(positions):
    # TODO(synk): cos/sin table built in the JAX wrapper (Mosaic sin/cos lowering
    # is not relied on); packed sign tables make it a single lane-dense DMA.
    inv_freq = 1.0 / (
        ROPE_THETA ** (jnp.arange(0, HEAD_DIM, 2, dtype=jnp.float32) / HEAD_DIM)
    )
    angles = positions.astype(jnp.float32)[:, None] * inv_freq[None, :]   # (T, D/2)
    cos = jnp.cos(angles)
    sin = jnp.sin(angles)
    # [cos | cos | -sin | sin]  ->  (T, 2*HEAD_DIM)
    return jnp.concatenate([cos, cos, -sin, sin], axis=-1)


@jax.jit
def gemma_forward(params, input_ids, positions):
    t = input_ids.shape[0]
    rope_packed = _rope_table(positions)
    ids2d = input_ids.astype(jnp.int32)[:, None]

    kernel = functools.partial(
        _gemma_fused_kernel,
        eps=RMS_EPS,
        scale=SCALE,
        normalizer=NORMALIZER,
        vocab=VOCAB,
        n_layers=N_LAYERS,
        n_heads=N_HEADS,
        n_kv_heads=N_KV_HEADS,
        head_dim=HEAD_DIM,
        intermediate=INTERMEDIATE,
    )
    # Single gridless invocation: every operand becomes a full-array VMEM block
    # (~650 KB of bf16 weights + tiny activations), one launch for the whole
    # 2-layer forward, no HBM round trips for intermediates.
    # TODO(synk): for big models (v7x 64 MiB VMEM) move to a layer-indexed grid
    # with pl.Buffered(2) weight streaming instead of all-resident weights.
    return pl.pallas_call(
        kernel,
        out_shape=jax.ShapeDtypeStruct((t, HIDDEN), ACT_DTYPE),
    )(
        ids2d,
        params["embed"],
        rope_packed,
        params["qkv_w"],
        params["o_w"],
        params["gate_up_w"],
        params["down_w"],
        params["norms"],
    )


# ----------------------------- params -----------------------------
def init_params(key):
    def dense(k, shape):
        return (0.02 * jax.random.normal(k, shape, dtype=jnp.float32)).astype(PARAM_DTYPE)

    keys = jax.random.split(key, 1 + 4 * N_LAYERS)
    params = {"embed": dense(keys[0], (VOCAB, HIDDEN))}
    qkv_w, o_w, gu_w, down_w = [], [], [], []
    for i in range(N_LAYERS):
        k0, k1, k2, k3 = keys[1 + 4 * i: 1 + 4 * (i + 1)]
        qkv_w.append(dense(k0, (HIDDEN, Q_SIZE + 2 * KV_SIZE)))
        o_w.append(dense(k1, (Q_SIZE, HIDDEN)))
        gu_w.append(dense(k2, (HIDDEN, 2 * INTERMEDIATE)))
        down_w.append(dense(k3, (INTERMEDIATE, HIDDEN)))
    params["qkv_w"] = jnp.stack(qkv_w)
    params["o_w"] = jnp.stack(o_w)
    params["gate_up_w"] = jnp.stack(gu_w)
    params["down_w"] = jnp.stack(down_w)
    # GemmaRMSNorm weights initialize to zero (effective scale = 1 + w).
    # Packed rows: 2l = input_ln[l], 2l+1 = post_attn_ln[l], 2L = final norm, rest pad.
    params["norms"] = jnp.zeros((NORM_ROWS, HIDDEN), jnp.float32)
    return params


# ----------------------------- main -----------------------------
if __name__ == "__main__":
    key = jax.random.PRNGKey(0)
    pkey, ikey = jax.random.split(key)
    params = init_params(pkey)

    input_ids = jax.random.randint(ikey, (SEQ,), 0, VOCAB, dtype=jnp.int32)
    positions = jnp.arange(SEQ, dtype=jnp.int32)

    out = gemma_forward(params, input_ids, positions)
    out = jax.block_until_ready(out)
    assert out.shape == (SEQ, HIDDEN) and out.dtype == ACT_DTYPE
    assert bool(jnp.all(jnp.isfinite(out)))
    print("KERNEL_OK")
</pallas_src>

<mosaic_0001>
module attributes {stable_mosaic.version = 11 : i64} {
  func.func @_gemma_fused_kernel(%arg0: memref<8x1xi32, #tpu.memory_space<vmem>>, %arg1: memref<256x128xbf16, #tpu.memory_space<vmem>>, %arg2: memref<8x128xf32, #tpu.memory_space<vmem>>, %arg3: memref<2x128x256xbf16, #tpu.memory_space<vmem>>, %arg4: memref<2x128x128xbf16, #tpu.memory_space<vmem>>, %arg5: memref<2x128x512xbf16, #tpu.memory_space<vmem>>, %arg6: memref<2x256x128xbf16, #tpu.memory_space<vmem>>, %arg7: memref<8x128xf32, #tpu.memory_space<vmem>>, %arg8: memref<8x128xf32, #tpu.memory_space<vmem>>) attributes {dimension_semantics = [], scalar_prefetch = 0 : i64, scratch_operands = 0 : i64, tpu.core_type = #tpu.core_type<tc>} {
    %c0 = arith.constant 0 : index
    %c0_0 = arith.constant 0 : index
    %0 = vector.load %arg0[%c0, %c0_0] : memref<8x1xi32, #tpu.memory_space<vmem>>, vector<8x1xi32>
    %1 = tpu.iota {dimensions = array<i32: 1>} : vector<8x256xi32>
    %2 = vector.broadcast %0 : vector<8x1xi32> to vector<8x256xi32>
    %3 = arith.cmpi eq, %1, %2 : vector<8x256xi32>
    %cst = arith.constant 1.000000e+00 : f32
    %cst_1 = arith.constant 0.000000e+00 : f32
    %4 = vector.broadcast %cst : f32 to vector<8x256xf32>
    %5 = vector.broadcast %cst_1 : f32 to vector<8x256xf32>
    %6 = arith.select %3, %4, %5 : vector<8x256xi1>, vector<8x256xf32>
    %7 = arith.truncf %6 : vector<8x256xf32> to vector<8x256xbf16>
    %c0_2 = arith.constant 0 : index
    %c0_3 = arith.constant 0 : index
    %8 = vector.load %arg1[%c0_2, %c0_3] : memref<256x128xbf16, #tpu.memory_space<vmem>>, vector<256x128xbf16>
    %cst_4 = arith.constant dense<0.000000e+00> : vector<8x128xf32>
    %9 = tpu.matmul %7, %8, %cst_4 {dimension_numbers = #tpu.dot_dimension_numbers<[1], [0], [0], [1], [0, 0, 1, 1], [], []>} : vector<8x256xbf16>, vector<256x128xbf16>, vector<8x128xf32> -> vector<8x128xf32>
    %cst_5 = arith.constant 11.3137083 : f32
    %10 = vector.broadcast %cst_5 : f32 to vector<8x128xf32>
    %11 = arith.mulf %9, %10 : vector<8x128xf32>
    %c0_6 = arith.constant 0 : index
    %c0_7 = arith.constant 0 : index
    %12 = vector.load %arg2[%c0_6, %c0_7] : memref<8x128xf32, #tpu.memory_space<vmem>>, vector<8x128xf32>
    %13 = vector.extract_strided_slice %12 {offsets = [0, 0], sizes = [8, 64], strides = [1, 1]} : vector<8x128xf32> to vector<8x64xf32>
    %14 = vector.extract_strided_slice %12 {offsets = [0, 64], sizes = [8, 64], strides = [1, 1]} : vector<8x128xf32> to vector<8x64xf32>
    %15 = tpu.iota {dimensions = array<i32: 0>} : vector<8x8xi32>
    %16 = tpu.iota {dimensions = array<i32: 1>} : vector<8x8xi32>
    %17 = arith.cmpi sle, %16, %15 : vector<8x8xi32>
    %c0_8 = arith.constant 0 : index
    %c0_9 = arith.constant 0 : index
    %18 = vector.load %arg7[%c0_8, %c0_9] : memref<8x128xf32, #tpu.memory_space<vmem>>, vector<1x128xf32>
    %c1 = arith.constant 1 : index
    %c0_10 = arith.constant 0 : index
    %19 = vector.load %arg7[%c1, %c0_10] : memref<8x128xf32, #tpu.memory_space<vmem>>, vector<1x128xf32>
    %20 = arith.mulf %11, %11 : vector<8x128xf32>
    %cst_11 = arith.constant dense<0.000000e+00> : vector<8xf32>
    %21 = vector.multi_reduction <add>, %20, %cst_11 [1] : vector<8x128xf32> to vector<8xf32>
    %22 = vector.shape_cast %21 : vector<8xf32> to vector<8x1xf32>
    %cst_12 = arith.constant 1.280000e+02 : f32
    %23 = vector.broadcast %cst_12 : f32 to vector<8x1xf32>
    %24 = arith.divf %22, %23 : vector<8x1xf32>
    %cst_13 = arith.constant 9.99999997E-7 : f32
    %25 = vector.broadcast %cst_13 : f32 to vector<8x1xf32>
    %26 = arith.addf %24, %25 : vector<8x1xf32>
    %27 = math.rsqrt %26 : vector<8x1xf32>
    %28 = vector.broadcast %27 : vector<8x1xf32> to vector<8x128xf32>
    %29 = arith.mulf %11, %28 : vector<8x128xf32>
    %cst_14 = arith.constant 1.000000e+00 : f32
    %30 = vector.broadcast %cst_14 : f32 to vector<1x128xf32>
    %31 = arith.addf %30, %18 : vector<1x128xf32>
    %32 = vector.broadcast %31 : vector<1x128xf32> to vector<8x128xf32>
    %33 = arith.mulf %29, %32 : vector<8x128xf32>
    %34 = arith.truncf %33 : vector<8x128xf32> to vector<8x128xbf16>
    %c0_15 = arith.constant 0 : index
    %c0_16 = arith.constant 0 : index
    %c0_17 = arith.constant 0 : index
    %35 = vector.load %arg3[%c0_15, %c0_16, %c0_17] : memref<2x128x256xbf16, #tpu.memory_space<vmem>>, vector<1x128x256xbf16>
    %36 = vector.shape_cast %35 : vector<1x128x256xbf16> to vector<128x256xbf16>
    %cst_18 = arith.constant dense<0.000000e+00> : vector<8x256xf32>
    %37 = tpu.matmul %34, %36, %cst_18 {dimension_numbers = #tpu.dot_dimension_numbers<[1], [0], [0], [1], [0, 0, 1, 1], [], []>} : vector<8x128xbf16>, vector<128x256xbf16>, vector<8x256xf32> -> vector<8x256xf32>
    %38 = vector.extract_strided_slice %37 {offsets = [0, 128], sizes = [8, 64], strides = [1, 1]} : vector<8x256xf32> to vector<8x64xf32>
    %39 = vector.extract_strided_slice %38 {offsets = [0, 32], sizes = [8, 32], strides = [1, 1]} : vector<8x64xf32> to vector<8x32xf32>
    %40 = vector.extract_strided_slice %38 {offsets = [0, 0], sizes = [8, 32], strides = [1, 1]} : vector<8x64xf32> to vector<8x32xf32>
    %41 = tpu.concatenate %39, %40 in 1 : vector<8x32xf32>, vector<8x32xf32> -> vector<8x64xf32>
    %42 = arith.mulf %38, %13 : vector<8x64xf32>
    %43 = arith.mulf %41, %14 : vector<8x64xf32>
    %44 = arith.addf %42, %43 : vector<8x64xf32>
    %45 = vector.extract_strided_slice %37 {offsets = [0, 192], sizes = [8, 64], strides = [1, 1]} : vector<8x256xf32> to vector<8x64xf32>
    %46 = arith.truncf %45 : vector<8x64xf32> to vector<8x64xbf16>
    %47 = vector.extract_strided_slice %37 {offsets = [0, 0], sizes = [8, 64], strides = [1, 1]} : vector<8x256xf32> to vector<8x64xf32>
    %48 = vector.extract_strided_slice %47 {offsets = [0, 32], sizes = [8, 32], strides = [1, 1]} : vector<8x64xf32> to vector<8x32xf32>
    %49 = vector.extract_strided_slice %47 {offsets = [0, 0], sizes = [8, 32], strides = [1, 1]} : vector<8x64xf32> to vector<8x32xf32>
    %50 = tpu.concatenate %48, %49 in 1 : vector<8x32xf32>, vector<8x32xf32> -> vector<8x64xf32>
    %51 = arith.mulf %47, %13 : vector<8x64xf32>
    %52 = arith.mulf %50, %14 : vector<8x64xf32>
    %53 = arith.addf %51, %52 : vector<8x64xf32>
    %cst_19 = arith.constant dense<0.000000e+00> : vector<8x8xf32>
    %54 = tpu.matmul %53, %44, %cst_19 {dimension_numbers = #tpu.dot_dimension_numbers<[1], [1], [0], [0], [0, 0, 1, 0], [], []>} : vector<8x64xf32>, vector<8x64xf32>, vector<8x8xf32> -> vector<8x8xf32>
    %cst_20 = arith.constant 1.250000e-01 : f32
    %55 = vector.broadcast %cst_20 : f32 to vector<8x8xf32>
    %56 = arith.mulf %54, %55 : vector<8x8xf32>
    %cst_21 = arith.constant -1.000000e+30 : f32
    %57 = vector.broadcast %cst_21 : f32 to vector<8x8xf32>
    %58 = arith.select %17, %56, %57 : vector<8x8xi1>, vector<8x8xf32>
    %cst_22 = arith.constant dense<0xFF800000> : vector<8xf32>
    %59 = vector.multi_reduction <maximumf>, %58, %cst_22 [1] : vector<8x8xf32> to vector<8xf32>
    %60 = vector.shape_cast %59 : vector<8xf32> to vector<8x1xf32>
    %61 = vector.broadcast %60 : vector<8x1xf32> to vector<8x8xf32>
    %62 = arith.subf %58, %61 : vector<8x8xf32>
    %63 = math.exp %62 : vector<8x8xf32>
    %cst_23 = arith.constant dense<0.000000e+00> : vector<8xf32>
    %64 = vector.multi_reduction <add>, %63, %cst_23 [1] : vector<8x8xf32> to vector<8xf32>
    %65 = vector.shape_cast %64 : vector<8xf32> to vector<8x1xf32>
    %66 = tpu.reciprocal %65 {approx = true} : vector<8x1xf32> -> vector<8x1xf32>
    %67 = vector.broadcast %66 : vector<8x1xf32> to vector<8x8xf32>
    %68 = arith.mulf %63, %67 : vector<8x8xf32>
    %69 = arith.truncf %68 : vector<8x8xf32> to vector<8x8xbf16>
    %cst_24 = arith.constant dense<0.000000e+00> : vector<8x64xf32>
    %70 = tpu.matmul %69, %46, %cst_24 {dimension_numbers = #tpu.dot_dimension_numbers<[1], [0], [0], [1], [0, 0, 1, 1], [], []>} : vector<8x8xbf16>, vector<8x64xbf16>, vector<8x64xf32> -> vector<8x64xf32>
    %71 = vector.extract_strided_slice %37 {offsets = [0, 64], sizes = [8, 64], strides = [1, 1]} : vector<8x256xf32> to vector<8x64xf32>
    %72 = vector.extract_strided_slice %71 {offsets = [0, 32], sizes = [8, 32], strides = [1, 1]} : vector<8x64xf32> to vector<8x32xf32>
    %73 = vector.extract_strided_slice %71 {offsets = [0, 0], sizes = [8, 32], strides = [1, 1]} : vector<8x64xf32> to vector<8x32xf32>
    %74 = tpu.concatenate %72, %73 in 1 : vector<8x32xf32>, vector<8x32xf32> -> vector<8x64xf32>
    %75 = arith.mulf %71, %13 : vector<8x64xf32>
    %76 = arith.mulf %74, %14 : vector<8x64xf32>
    %77 = arith.addf %75, %76 : vector<8x64xf32>
    %cst_25 = arith.constant dense<0.000000e+00> : vector<8x8xf32>
    %78 = tpu.matmul %77, %44, %cst_25 {dimension_numbers = #tpu.dot_dimension_numbers<[1], [1], [0], [0], [0, 0, 1, 0], [], []>} : vector<8x64xf32>, vector<8x64xf32>, vector<8x8xf32> -> vector<8x8xf32>
    %cst_26 = arith.constant 1.250000e-01 : f32
    %79 = vector.broadcast %cst_26 : f32 to vector<8x8xf32>
    %80 = arith.mulf %78, %79 : vector<8x8xf32>
    %cst_27 = arith.constant -1.000000e+30 : f32
    %81 = vector.broadcast %cst_27 : f32 to vector<8x8xf32>
    %82 = arith.select %17, %80, %81 : vector<8x8xi1>, vector<8x8xf32>
    %cst_28 = arith.constant dense<0xFF800000> : vector<8xf32>
    %83 = vector.multi_reduction <maximumf>, %82, %cst_28 [1] : vector<8x8xf32> to vector<8xf32>
    %84 = vector.shape_cast %83 : vector<8xf32> to vector<8x1xf32>
    %85 = vector.broadcast %84 : vector<8x1xf32> to vector<8x8xf32>
    %86 = arith.subf %82, %85 : vector<8x8xf32>
    %87 = math.exp %86 : vector<8x8xf32>
    %cst_29 = arith.constant dense<0.000000e+00> : vector<8xf32>
    %88 = vector.multi_reduction <add>, %87, %cst_29 [1] : vector<8x8xf32> to vector<8xf32>
    %89 = vector.shape_cast %88 : vector<8xf32> to vector<8x1xf32>
    %90 = tpu.reciprocal %89 {approx = true} : vector<8x1xf32> -> vector<8x1xf32>
    %91 = vector.broadcast %90 : vector<8x1xf32> to vector<8x8xf32>
    %92 = arith.mulf %87, %91 : vector<8x8xf32>
    %93 = arith.truncf %92 : vector<8x8xf32> to vector<8x8xbf16>
    %cst_30 = arith.constant dense<0.000000e+00> : vector<8x64xf32>
    %94 = tpu.matmul %93, %46, %cst_30 {dimension_numbers = #tpu.dot_dimension_numbers<[1], [0], [0], [1], [0, 0, 1, 1], [], []>} : vector<8x8xbf16>, vector<8x64xbf16>, vector<8x64xf32> -> vector<8x64xf32>
    %95 = tpu.concatenate %70, %94 in 1 : vector<8x64xf32>, vector<8x64xf32> -> vector<8x128xf32>
    %96 = arith.truncf %95 : vector<8x128xf32> to vector<8x128xbf16>
    %c0_31 = arith.constant 0 : index
    %c0_32 = arith.constant 0 : index
    %c0_33 = arith.constant 0 : index
    %97 = vector.load %arg4[%c0_31, %c0_32, %c0_33] : memref<2x128x128xbf16, #tpu.memory_space<vmem>>, vector<1x128x128xbf16>
    %98 = vector.shape_cast %97 : vector<1x128x128xbf16> to vector<128x128xbf16>
    %cst_34 = arith.constant dense<0.000000e+00> : vector<8x128xf32>
    %99 = tpu.matmul %96, %98, %cst_34 {dimension_numbers = #tpu.dot_dimension_numbers<[1], [0], [0], [1], [0, 0, 1, 1], [], []>} : vector<8x128xbf16>, vector<128x128xbf16>, vector<8x128xf32> -> vector<8x128xf32>
    %100 = arith.addf %99, %11 : vector<8x128xf32>
    %101 = arith.mulf %100, %100 : vector<8x128xf32>
    %cst_35 = arith.constant dense<0.000000e+00> : vector<8xf32>
    %102 = vector.multi_reduction <add>, %101, %cst_35 [1] : vector<8x128xf32> to vector<8xf32>
    %103 = vector.shape_cast %102 : vector<8xf32> to vector<8x1xf32>
    %cst_36 = arith.constant 1.280000e+02 : f32
    %104 = vector.broadcast %cst_36 : f32 to vector<8x1xf32>
    %105 = arith.divf %103, %104 : vector<8x1xf32>
    %cst_37 = arith.constant 9.99999997E-7 : f32
    %106 = vector.broadcast %cst_37 : f32 to vector<8x1xf32>
    %107 = arith.addf %105, %106 : vector<8x1xf32>
    %108 = math.rsqrt %107 : vector<8x1xf32>
    %109 = vector.broadcast %108 : vector<8x1xf32> to vector<8x128xf32>
    %110 = arith.mulf %100, %109 : vector<8x128xf32>
    %cst_38 = arith.constant 1.000000e+00 : f32
    %111 = vector.broadcast %cst_38 : f32 to vector<1x128xf32>
    %112 = arith.addf %111, %19 : vector<1x128xf32>
    %113 = vector.broadcast %112 : vector<1x128xf32> to vector<8x128xf32>
    %114 = arith.mulf %110, %113 : vector<8x128xf32>
    %115 = arith.truncf %114 : vector<8x128xf32> to vector<8x128xbf16>
    %c0_39 = arith.constant 0 : index
    %c0_40 = arith.constant 0 : index
    %c0_41 = arith.constant 0 : index
    %116 = vector.load %arg5[%c0_39, %c0_40, %c0_41] : memref<2x128x512xbf16, #tpu.memory_space<vmem>>, vector<1x128x512xbf16>
    %117 = vector.shape_cast %116 : vector<1x128x512xbf16> to vector<128x512xbf16>
    %cst_42 = arith.constant dense<0.000000e+00> : vector<8x512xf32>
    %118 = tpu.matmul %115, %117, %cst_42 {dimension_numbers = #tpu.dot_dimension_numbers<[1], [0], [0], [1], [0, 0, 1, 1], [], []>} : vector<8x128xbf16>, vector<128x512xbf16>, vector<8x512xf32> -> vector<8x512xf32>
    %119 = vector.extract_strided_slice %118 {offsets = [0, 0], sizes = [8, 256], strides = [1, 1]} : vector<8x512xf32> to vector<8x256xf32>
    %120 = vector.extract_strided_slice %118 {offsets = [0, 256], sizes = [8, 256], strides = [1, 1]} : vector<8x512xf32> to vector<8x256xf32>
    %cst_43 = arith.constant 5.000000e-01 : f32
    %121 = vector.broadcast %cst_43 : f32 to vector<8x256xf32>
    %122 = arith.mulf %121, %119 : vector<8x256xf32>
    %cst_44 = arith.constant 4.471500e-02 : f32
    %123 = vector.broadcast %cst_44 : f32 to vector<8x256xf32>
    %124 = arith.mulf %123, %119 : vector<8x256xf32>
    %125 = arith.mulf %124, %119 : vector<8x256xf32>
    %126 = arith.mulf %125, %119 : vector<8x256xf32>
    %127 = arith.addf %119, %126 : vector<8x256xf32>
    %cst_45 = arith.constant 0.797884583 : f32
    %128 = vector.broadcast %cst_45 : f32 to vector<8x256xf32>
    %129 = arith.mulf %128, %127 : vector<8x256xf32>
    %130 = math.tanh %129 : vector<8x256xf32>
    %cst_46 = arith.constant 1.000000e+00 : f32
    %131 = vector.broadcast %cst_46 : f32 to vector<8x256xf32>
    %132 = arith.addf %131, %130 : vector<8x256xf32>
    %133 = arith.mulf %122, %132 : vector<8x256xf32>
    %134 = arith.mulf %133, %120 : vector<8x256xf32>
    %135 = arith.truncf %134 : vector<8x256xf32> to vector<8x256xbf16>
    %c0_47 = arith.constant 0 : index
    %c0_48 = arith.constant 0 : index
    %c0_49 = arith.constant 0 : index
    %136 = vector.load %arg6[%c0_47, %c0_48, %c0_49] : memref<2x256x128xbf16, #tpu.memory_space<vmem>>, vector<1x256x128xbf16>
    %137 = vector.shape_cast %136 : vector<1x256x128xbf16> to vector<256x128xbf16>
    %cst_50 = arith.constant dense<0.000000e+00> : vector<8x128xf32>
    %138 = tpu.matmul %135, %137, %cst_50 {dimension_numbers = #tpu.dot_dimension_numbers<[1], [0], [0], [1], [0, 0, 1, 1], [], []>} : vector<8x256xbf16>, vector<256x128xbf16>, vector<8x128xf32> -> vector<8x128xf32>
    %c2 = arith.constant 2 : index
    %c0_51 = arith.constant 0 : index
    %139 = vector.load %arg7[%c2, %c0_51] : memref<8x128xf32, #tpu.memory_space<vmem>>, vector<1x128xf32>
    %c3 = arith.constant 3 : index
    %c0_52 = arith.constant 0 : index
    %140 = vector.load %arg7[%c3, %c0_52] : memref<8x128xf32, #tpu.memory_space<vmem>>, vector<1x128xf32>
    %141 = arith.addf %138, %100 : vector<8x128xf32>
    %142 = arith.mulf %141, %141 : vector<8x128xf32>
    %cst_53 = arith.constant dense<0.000000e+00> : vector<8xf32>
    %143 = vector.multi_reduction <add>, %142, %cst_53 [1] : vector<8x128xf32> to vector<8xf32>
    %144 = vector.shape_cast %143 : vector<8xf32> to vector<8x1xf32>
    %cst_54 = arith.constant 1.280000e+02 : f32
    %145 = vector.broadcast %cst_54 : f32 to vector<8x1xf32>
    %146 = arith.divf %144, %145 : vector<8x1xf32>
    %cst_55 = arith.constant 9.99999997E-7 : f32
    %147 = vector.broadcast %cst_55 : f32 to vector<8x1xf32>
    %148 = arith.addf %146, %147 : vector<8x1xf32>
    %149 = math.rsqrt %148 : vector<8x1xf32>
    %150 = vector.broadcast %149 : vector<8x1xf32> to vector<8x128xf32>
    %151 = arith.mulf %141, %150 : vector<8x128xf32>
    %cst_56 = arith.constant 1.000000e+00 : f32
    %152 = vector.broadcast %cst_56 : f32 to vector<1x128xf32>
    %153 = arith.addf %152, %139 : vector<1x128xf32>
    %154 = vector.broadcast %153 : vector<1x128xf32> to vector<8x128xf32>
    %155 = arith.mulf %151, %154 : vector<8x128xf32>
    %156 = arith.truncf %155 : vector<8x128xf32> to vector<8x128xbf16>
    %c1_57 = arith.constant 1 : index
    %c0_58 = arith.constant 0 : index
    %c0_59 = arith.constant 0 : index
    %157 = vector.load %arg3[%c1_57, %c0_58, %c0_59] : memref<2x128x256xbf16, #tpu.memory_space<vmem>>, vector<1x128x256xbf16>
    %158 = vector.shape_cast %157 : vector<1x128x256xbf16> to vector<128x256xbf16>
    %cst_60 = arith.constant dense<0.000000e+00> : vector<8x256xf32>
    %159 = tpu.matmul %156, %158, %cst_60 {dimension_numbers = #tpu.dot_dimension_numbers<[1], [0], [0], [1], [0, 0, 1, 1], [], []>} : vector<8x128xbf16>, vector<128x256xbf16>, vector<8x256xf32> -> vector<8x256xf32>
    %160 = vector.extract_strided_slice %159 {offsets = [0, 128], sizes = [8, 64], strides = [1, 1]} : vector<8x256xf32> to vector<8x64xf32>
    %161 = vector.extract_strided_slice %160 {offsets = [0, 32], sizes = [8, 32], strides = [1, 1]} : vector<8x64xf32> to vector<8x32xf32>
    %162 = vector.extract_strided_slice %160 {offsets = [0, 0], sizes = [8, 32], strides = [1, 1]} : vector<8x64xf32> to vector<8x32xf32>
    %163 = tpu.concatenate %161, %162 in 1 : vector<8x32xf32>, vector<8x32xf32> -> vector<8x64xf32>
    %164 = arith.mulf %160, %13 : vector<8x64xf32>
    %165 = arith.mulf %163, %14 : vector<8x64xf32>
    %166 = arith.addf %164, %165 : vector<8x64xf32>
    %167 = vector.extract_strided_slice %159 {offsets = [0, 192], sizes = [8, 64], strides = [1, 1]} : vector<8x256xf32> to vector<8x64xf32>
    %168 = arith.truncf %167 : vector<8x64xf32> to vector<8x64xbf16>
    %169 = vector.extract_strided_slice %159 {offsets = [0, 0], sizes = [8, 64], strides = [1, 1]} : vector<8x256xf32> to vector<8x64xf32>
    %170 = vector.extract_strided_slice %169 {offsets = [0, 32], sizes = [8, 32], strides = [1, 1]} : vector<8x64xf32> to vector<8x32xf32>
    %171 = vector.extract_strided_slice %169 {offsets = [0, 0], sizes = [8, 32], strides = [1, 1]} : vector<8x64xf32> to vector<8x32xf32>
    %172 = tpu.concatenate %170, %171 in 1 : vector<8x32xf32>, vector<8x32xf32> -> vector<8x64xf32>
    %173 = arith.mulf %169, %13 : vector<8x64xf32>
    %174 = arith.mulf %172, %14 : vector<8x64xf32>
    %175 = arith.addf %173, %174 : vector<8x64xf32>
    %cst_61 = arith.constant dense<0.000000e+00> : vector<8x8xf32>
    %176 = tpu.matmul %175, %166, %cst_61 {dimension_numbers = #tpu.dot_dimension_numbers<[1], [1], [0], [0], [0, 0, 1, 0], [], []>} : vector<8x64xf32>, vector<8x64xf32>, vector<8x8xf32> -> vector<8x8xf32>
    %cst_62 = arith.constant 1.250000e-01 : f32
    %177 = vector.broadcast %cst_62 : f32 to vector<8x8xf32>
    %178 = arith.mulf %176, %177 : vector<8x8xf32>
    %cst_63 = arith.constant -1.000000e+30 : f32
    %179 = vector.broadcast %cst_63 : f32 to vector<8x8xf32>
    %180 = arith.select %17, %178, %179 : vector<8x8xi1>, vector<8x8xf32>
    %cst_64 = arith.constant dense<0xFF800000> : vector<8xf32>
    %181 = vector.multi_reduction <maximumf>, %180, %cst_64 [1] : vector<8x8xf32> to vector<8xf32>
    %182 = vector.shape_cast %181 : vector<8xf32> to vector<8x1xf32>
    %183 = vector.broadcast %182 : vector<8x1xf32> to vector<8x8xf32>
    %184 = arith.subf %180, %183 : vector<8x8xf32>
    %185 = math.exp %184 : vector<8x8xf32>
    %cst_65 = arith.constant dense<0.000000e+00> : vector<8xf32>
    %186 = vector.multi_reduction <add>, %185, %cst_65 [1] : vector<8x8xf32> to vector<8xf32>
    %187 = vector.shape_cast %186 : vector<8xf32> to vector<8x1xf32>
    %188 = tpu.reciprocal %187 {approx = true} : vector<8x1xf32> -> vector<8x1xf32>
    %189 = vector.broadcast %188 : vector<8x1xf32> to vector<8x8xf32>
    %190 = arith.mulf %185, %189 : vector<8x8xf32>
    %191 = arith.truncf %190 : vector<8x8xf32> to vector<8x8xbf16>
    %cst_66 = arith.constant dense<0.000000e+00> : vector<8x64xf32>
    %192 = tpu.matmul %191, %168, %cst_66 {dimension_numbers = #tpu.dot_dimension_numbers<[1], [0], [0], [1], [0, 0, 1, 1], [], []>} : vector<8x8xbf16>, vector<8x64xbf16>, vector<8x64xf32> -> vector<8x64xf32>
    %193 = vector.extract_strided_slice %159 {offsets = [0, 64], sizes = [8, 64], strides = [1, 1]} : vector<8x256xf32> to vector<8x64xf32>
    %194 = vector.extract_strided_slice %193 {offsets = [0, 32], sizes = [8, 32], strides = [1, 1]} : vector<8x64xf32> to vector<8x32xf32>
    %195 = vector.extract_strided_slice %193 {offsets = [0, 0], sizes = [8, 32], strides = [1, 1]} : vector<8x64xf32> to vector<8x32xf32>
    %196 = tpu.concatenate %194, %195 in 1 : vector<8x32xf32>, vector<8x32xf32> -> vector<8x64xf32>
    %197 = arith.mulf %193, %13 : vector<8x64xf32>
    %198 = arith.mulf %196, %14 : vector<8x64xf32>
    %199 = arith.addf %197, %198 : vector<8x64xf32>
    %cst_67 = arith.constant dense<0.000000e+00> : vector<8x8xf32>
    %200 = tpu.matmul %199, %166, %cst_67 {dimension_numbers = #tpu.dot_dimension_numbers<[1], [1], [0], [0], [0, 0, 1, 0], [], []>} : vector<8x64xf32>, vector<8x64xf32>, vector<8x8xf32> -> vector<8x8xf32>
    %cst_68 = arith.constant 1.250000e-01 : f32
    %201 = vector.broadcast %cst_68 : f32 to vector<8x8xf32>
    %202 = arith.mulf %200, %201 : vector<8x8xf32>
    %cst_69 = arith.constant -1.000000e+30 : f32
    %203 = vector.broadcast %cst_69 : f32 to vector<8x8xf32>
    %204 = arith.select %17, %202, %203 : vector<8x8xi1>, vector<8x8xf32>
    %cst_70 = arith.constant dense<0xFF800000> : vector<8xf32>
    %205 = vector.multi_reduction <maximumf>, %204, %cst_70 [1] : vector<8x8xf32> to vector<8xf32>
    %206 = vector.shape_cast %205 : vector<8xf32> to vector<8x1xf32>
    %207 = vector.broadcast %206 : vector<8x1xf32> to vector<8x8xf32>
    %208 = arith.subf %204, %207 : vector<8x8xf32>
    %209 = math.exp %208 : vector<8x8xf32>
    %cst_71 = arith.constant dense<0.000000e+00> : vector<8xf32>
    %210 = vector.multi_reduction <add>, %209, %cst_71 [1] : vector<8x8xf32> to vector<8xf32>
    %211 = vector.shape_cast %210 : vector<8xf32> to vector<8x1xf32>
    %212 = tpu.reciprocal %211 {approx = true} : vector<8x1xf32> -> vector<8x1xf32>
    %213 = vector.broadcast %212 : vector<8x1xf32> to vector<8x8xf32>
    %214 = arith.mulf %209, %213 : vector<8x8xf32>
    %215 = arith.truncf %214 : vector<8x8xf32> to vector<8x8xbf16>
    %cst_72 = arith.constant dense<0.000000e+00> : vector<8x64xf32>
    %216 = tpu.matmul %215, %168, %cst_72 {dimension_numbers = #tpu.dot_dimension_numbers<[1], [0], [0], [1], [0, 0, 1, 1], [], []>} : vector<8x8xbf16>, vector<8x64xbf16>, vector<8x64xf32> -> vector<8x64xf32>
    %217 = tpu.concatenate %192, %216 in 1 : vector<8x64xf32>, vector<8x64xf32> -> vector<8x128xf32>
    %218 = arith.truncf %217 : vector<8x128xf32> to vector<8x128xbf16>
    %c1_73 = arith.constant 1 : index
    %c0_74 = arith.constant 0 : index
    %c0_75 = arith.constant 0 : index
    %219 = vector.load %arg4[%c1_73, %c0_74, %c0_75] : memref<2x128x128xbf16, #tpu.memory_space<vmem>>, vector<1x128x128xbf16>
    %220 = vector.shape_cast %219 : vector<1x128x128xbf16> to vector<128x128xbf16>
    %cst_76 = arith.constant dense<0.000000e+00> : vector<8x128xf32>
    %221 = tpu.matmul %218, %220, %cst_76 {dimension_numbers = #tpu.dot_dimension_numbers<[1], [0], [0], [1], [0, 0, 1, 1], [], []>} : vector<8x128xbf16>, vector<128x128xbf16>, vector<8x128xf32> -> vector<8x128xf32>
    %222 = arith.addf %221, %141 : vector<8x128xf32>
    %223 = arith.mulf %222, %222 : vector<8x128xf32>
    %cst_77 = arith.constant dense<0.000000e+00> : vector<8xf32>
    %224 = vector.multi_reduction <add>, %223, %cst_77 [1] : vector<8x128xf32> to vector<8xf32>
    %225 = vector.shape_cast %224 : vector<8xf32> to vector<8x1xf32>
    %cst_78 = arith.constant 1.280000e+02 : f32
    %226 = vector.broadcast %cst_78 : f32 to vector<8x1xf32>
    %227 = arith.divf %225, %226 : vector<8x1xf32>
    %cst_79 = arith.constant 9.99999997E-7 : f32
    %228 = vector.broadcast %cst_79 : f32 to vector<8x1xf32>
    %229 = arith.addf %227, %228 : vector<8x1xf32>
    %230 = math.rsqrt %229 : vector<8x1xf32>
    %231 = vector.broadcast %230 : vector<8x1xf32> to vector<8x128xf32>
    %232 = arith.mulf %222, %231 : vector<8x128xf32>
    %cst_80 = arith.constant 1.000000e+00 : f32
    %233 = vector.broadcast %cst_80 : f32 to vector<1x128xf32>
    %234 = arith.addf %233, %140 : vector<1x128xf32>
    %235 = vector.broadcast %234 : vector<1x128xf32> to vector<8x128xf32>
    %236 = arith.mulf %232, %235 : vector<8x128xf32>
    %237 = arith.truncf %236 : vector<8x128xf32> to vector<8x128xbf16>
    %c1_81 = arith.constant 1 : index
    %c0_82 = arith.constant 0 : index
    %c0_83 = arith.constant 0 : index
    %238 = vector.load %arg5[%c1_81, %c0_82, %c0_83] : memref<2x128x512xbf16, #tpu.memory_space<vmem>>, vector<1x128x512xbf16>
    %239 = vector.shape_cast %238 : vector<1x128x512xbf16> to vector<128x512xbf16>
    %cst_84 = arith.constant dense<0.000000e+00> : vector<8x512xf32>
    %240 = tpu.matmul %237, %239, %cst_84 {dimension_numbers = #tpu.dot_dimension_numbers<[1], [0], [0], [1], [0, 0, 1, 1], [], []>} : vector<8x128xbf16>, vector<128x512xbf16>, vector<8x512xf32> -> vector<8x512xf32>
    %241 = vector.extract_strided_slice %240 {offsets = [0, 0], sizes = [8, 256], strides = [1, 1]} : vector<8x512xf32> to vector<8x256xf32>
    %242 = vector.extract_strided_slice %240 {offsets = [0, 256], sizes = [8, 256], strides = [1, 1]} : vector<8x512xf32> to vector<8x256xf32>
    %cst_85 = arith.constant 5.000000e-01 : f32
    %243 = vector.broadcast %cst_85 : f32 to vector<8x256xf32>
    %244 = arith.mulf %243, %241 : vector<8x256xf32>
    %cst_86 = arith.constant 4.471500e-02 : f32
    %245 = vector.broadcast %cst_86 : f32 to vector<8x256xf32>
    %246 = arith.mulf %245, %241 : vector<8x256xf32>
    %247 = arith.mulf %246, %241 : vector<8x256xf32>
    %248 = arith.mulf %247, %241 : vector<8x256xf32>
    %249 = arith.addf %241, %248 : vector<8x256xf32>
    %cst_87 = arith.constant 0.797884583 : f32
    %250 = vector.broadcast %cst_87 : f32 to vector<8x256xf32>
    %251 = arith.mulf %250, %249 : vector<8x256xf32>
    %252 = math.tanh %251 : vector<8x256xf32>
    %cst_88 = arith.constant 1.000000e+00 : f32
    %253 = vector.broadcast %cst_88 : f32 to vector<8x256xf32>
    %254 = arith.addf %253, %252 : vector<8x256xf32>
    %255 = arith.mulf %244, %254 : vector<8x256xf32>
    %256 = arith.mulf %255, %242 : vector<8x256xf32>
    %257 = arith.truncf %256 : vector<8x256xf32> to vector<8x256xbf16>
    %c1_89 = arith.constant 1 : index
    %c0_90 = arith.constant 0 : index
    %c0_91 = arith.constant 0 : index
    %258 = vector.load %arg6[%c1_89, %c0_90, %c0_91] : memref<2x256x128xbf16, #tpu.memory_space<vmem>>, vector<1x256x128xbf16>
    %259 = vector.shape_cast %258 : vector<1x256x128xbf16> to vector<256x128xbf16>
    %cst_92 = arith.constant dense<0.000000e+00> : vector<8x128xf32>
    %260 = tpu.matmul %257, %259, %cst_92 {dimension_numbers = #tpu.dot_dimension_numbers<[1], [0], [0], [1], [0, 0, 1, 1], [], []>} : vector<8x256xbf16>, vector<256x128xbf16>, vector<8x128xf32> -> vector<8x128xf32>
    %261 = arith.addf %260, %222 : vector<8x128xf32>
    %c4 = arith.constant 4 : index
    %c0_93 = arith.constant 0 : index
    %262 = vector.load %arg7[%c4, %c0_93] : memref<8x128xf32, #tpu.memory_space<vmem>>, vector<1x128xf32>
    %263 = arith.mulf %261, %261 : vector<8x128xf32>
    %cst_94 = arith.constant dense<0.000000e+00> : vector<8xf32>
    %264 = vector.multi_reduction <add>, %263, %cst_94 [1] : vector<8x128xf32> to vector<8xf32>
    %265 = vector.shape_cast %264 : vector<8xf32> to vector<8x1xf32>
    %cst_95 = arith.constant 1.280000e+02 : f32
    %266 = vector.broadcast %cst_95 : f32 to vector<8x1xf32>
    %267 = arith.divf %265, %266 : vector<8x1xf32>
    %cst_96 = arith.constant 9.99999997E-7 : f32
    %268 = vector.broadcast %cst_96 : f32 to vector<8x1xf32>
    %269 = arith.addf %267, %268 : vector<8x1xf32>
    %270 = math.rsqrt %269 : vector<8x1xf32>
    %271 = vector.broadcast %270 : vector<8x1xf32> to vector<8x128xf32>
    %272 = arith.mulf %261, %271 : vector<8x128xf32>
    %cst_97 = arith.constant 1.000000e+00 : f32
    %273 = vector.broadcast %cst_97 : f32 to vector<1x128xf32>
    %274 = arith.addf %273, %262 : vector<1x128xf32>
    %275 = vector.broadcast %274 : vector<1x128xf32> to vector<8x128xf32>
    %276 = arith.mulf %272, %275 : vector<8x128xf32>
    %c0_98 = arith.constant 0 : index
    %c0_99 = arith.constant 0 : index
    %277 = vector.load %arg8[%c0_98, %c0_99] : memref<8x128xf32, #tpu.memory_space<vmem>>, vector<8x128xf32>
    tpu.vector_store %arg8[%c0_98, %c0_99], %276 {strides = array<i32>} : memref<8x128xf32, #tpu.memory_space<vmem>>, vector<8x128xf32>,
    return
  }
}

</mosaic_0001>

<llo_original>
// kernel: gemma_forward.1
$region0: #{gemma_forward.1}
  #allocation0 [shape = 'u32[]', space=smem, size = 0x4, offset = 0x4, fixed_abs, tag = 'smem constant byte address 0x4 - core index']
  #allocation1 [shape = 'u32[144,128]{1,0:T(1,128)}', space=vmem, size = 0x12000, scoped, tag = 'internal scratch']
  %s0 = inlined_call_operand.vmem [shape: s32[8,1], index: 0, kind: input, shape index: {}]
  %s1 = inlined_call_operand.hbm [shape: bf16[256,128], index: 1, kind: input, shape index: {}]
  %s2 = inlined_call_operand.vmem [shape: f32[8,128], index: 2, kind: input, shape index: {}]
  %s3 = inlined_call_operand.hbm [shape: bf16[2,128,256], index: 3, kind: input, shape index: {}]
  %s4 = inlined_call_operand.hbm [shape: bf16[2,128,128], index: 4, kind: input, shape index: {}]
  %s5 = inlined_call_operand.hbm [shape: bf16[2,128,512], index: 5, kind: input, shape index: {}]
  %s6 = inlined_call_operand.hbm [shape: bf16[2,256,128], index: 6, kind: input, shape index: {}]
  %s7 = inlined_call_operand.vmem [shape: f32[8,128], index: 7, kind: input, shape index: {}]
  %s8 = inlined_call_operand.hbm [shape: f32[8,128], index: 8, kind: output, shape index: {}]
  %s9 = sld [smem:[#allocation0]]
  $region62: #{gemma_forward.1} parent=0
    _
  %s11 = ssub.s32 1, %s9
  %s12 = scalar_select 0, %s11, %s9
  $region1: #{gemma_forward.1} parent=0
    #allocation2 [shape = 'u8[65536]{0}', space=vmem, size = 0x10000, scoped, tag = 'input window, operand 1, single buffered']
    #allocation3 [shape = 's32[1]{0}', space=sflag, size = 0x4, scoped, tag = 'scoped memory for gemma_forward.1']
    #allocation4 [shape = 's32[1]{0}', space=sflag, size = 0x4, scoped, tag = 'scoped memory for gemma_forward.1']
    #allocation5 [shape = 'u8[131072]{0}', space=vmem, size = 0x20000, scoped, tag = 'input window, operand 3, single buffered']
    #allocation6 [shape = 's32[1]{0}', space=sflag, size = 0x4, scoped, tag = 'scoped memory for gemma_forward.1']
    #allocation7 [shape = 'u8[65536]{0}', space=vmem, size = 0x10000, scoped, tag = 'input window, operand 4, single buffered']
    #allocation8 [shape = 'u8[262144]{0}', space=vmem, size = 0x40000, scoped, tag = 'input window, operand 5, single buffered']
    #allocation9 [shape = 's32[1]{0}', space=sflag, size = 0x4, scoped, tag = 'scoped memory for gemma_forward.1']
    #allocation10 [shape = 'u8[131072]{0}', space=vmem, size = 0x20000, scoped, tag = 'input window, operand 6, single buffered']
    #allocation11 [shape = 'u8[4096]{0}', space=vmem, size = 0x1000, scoped, tag = 'output window, operand 0, single buffered']
    %13 = vsyncpa [#allocation3], 0
    %14 = vsyncpa [#allocation6], 0
    %15 = vsyncpa [#allocation9], 0
    %16 = vsyncpa [#allocation4], 0
    // Predicated region
    $region2: #{gemma_forward.1} parent=1 // pred_check
      _
    $region3: #{gemma_forward.1} parent=1 // pred_check_branch
      %18 = sbr.rel (0) target = $region5
    $region4: #{gemma_forward.1} parent=1 // pred_region
      _
    $region5: #{gemma_forward.1} parent=1 // pred_fallthru
      _
    // Predicated region
    $region6: #{gemma_forward.1} parent=1 // pred_check
      _
    $region7: #{gemma_forward.1} parent=1 // pred_check_branch
      %20 = sbr.rel (0) target = $region9
    $region8: #{gemma_forward.1} parent=1 // pred_region
      %s22 = ssub.s32 2048, 2048
      %23 = vsyncadd [#allocation3], %s22
      %s24 = sshll.u32 [#allocation2], 4
      %s25 = int_to_ptr.vmem [resolvable:$true] %s24
      %30 = dma.hbm_to_vmem [thread:$0]  %s1, 2048, %s25, [#allocation3], 64, 64, 4
    $region9: #{gemma_forward.1} parent=1 // pred_fallthru
      _
    // Predicated region
    $region10: #{gemma_forward.1} parent=1 // pred_check
      _
    $region11: #{gemma_forward.1} parent=1 // pred_check_branch
      %32 = sbr.rel (0) target = $region13
    $region12: #{gemma_forward.1} parent=1 // pred_region
      _
    $region13: #{gemma_forward.1} parent=1 // pred_fallthru
      _
    // Predicated region
    $region14: #{gemma_forward.1} parent=1 // pred_check
      _
    $region15: #{gemma_forward.1} parent=1 // pred_check_branch
      %34 = sbr.rel (0) target = $region17
    $region16: #{gemma_forward.1} parent=1 // pred_region
      %s36 = ssub.s32 4096, 4096
      %37 = vsyncadd [#allocation6], %s36
      %s38 = sshll.u32 [#allocation5], 4
      %s39 = int_to_ptr.vmem [resolvable:$true] %s38
      %44 = dma.hbm_to_vmem [thread:$0]  %s3, 4096, %s39, [#allocation6], 128, 128, 8
    $region17: #{gemma_forward.1} parent=1 // pred_fallthru
      _
    // Predicated region
    $region18: #{gemma_forward.1} parent=1 // pred_check
      _
    $region19: #{gemma_forward.1} parent=1 // pred_check_branch
      %46 = sbr.rel (0) target = $region21
    $region20: #{gemma_forward.1} parent=1 // pred_region
      %s48 = ssub.s32 2048, 2048
      %49 = vsyncadd [#allocation6], %s48
      %s50 = sshll.u32 [#allocation7], 4
      %s51 = int_to_ptr.vmem [resolvable:$true] %s50
      %56 = dma.hbm_to_vmem [thread:$0]  %s4, 2048, %s51, [#allocation6], 64, 64, 4
    $region21: #{gemma_forward.1} parent=1 // pred_fallthru
      _
    // Predicated region
    $region22: #{gemma_forward.1} parent=1 // pred_check
      _
    $region23: #{gemma_forward.1} parent=1 // pred_check_branch
      %58 = sbr.rel (0) target = $region25
    $region24: #{gemma_forward.1} parent=1 // pred_region
      %s60 = ssub.s32 8192, 8192
      %61 = vsyncadd [#allocation9], %s60
      %s62 = sshll.u32 [#allocation8], 4
      %s63 = int_to_ptr.vmem [resolvable:$true] %s62
      %68 = dma.hbm_to_vmem [thread:$0]  %s5, 8192, %s63, [#allocation9], 256, 256, 16
    $region25: #{gemma_forward.1} parent=1 // pred_fallthru
      _
    // Predicated region
    $region26: #{gemma_forward.1} parent=1 // pred_check
      _
    $region27: #{gemma_forward.1} parent=1 // pred_check_branch
      %70 = sbr.rel (0) target = $region29
    $region28: #{gemma_forward.1} parent=1 // pred_region
      %s72 = ssub.s32 4096, 4096
      %73 = vsyncadd [#allocation9], %s72
      %s74 = sshll.u32 [#allocation10], 4
      %s75 = int_to_ptr.vmem [resolvable:$true] %s74
      %80 = dma.hbm_to_vmem [thread:$0]  %s6, 4096, %s75, [#allocation9], 64, 64, 4
    $region29: #{gemma_forward.1} parent=1 // pred_fallthru
      _
    // Predicated region
    $region30: #{gemma_forward.1} parent=1 // pred_check
      _
    $region31: #{gemma_forward.1} parent=1 // pred_check_branch
      %82 = sbr.rel (0) target = $region33
    $region32: #{gemma_forward.1} parent=1 // pred_region
      _
    $region33: #{gemma_forward.1} parent=1 // pred_fallthru
      _
    // Predicated region
    $region34: #{gemma_forward.1} parent=1 // pred_check
      _
    $region35: #{gemma_forward.1} parent=1 // pred_check_branch
      %84 = sbr.rel (0) target = $region37
    $region36: #{gemma_forward.1} parent=1 // pred_region
      %85 = dma.done [#allocation3], 2048
    $region37: #{gemma_forward.1} parent=1 // pred_fallthru
      _
    // Predicated region
    $region38: #{gemma_forward.1} parent=1 // pred_check
      _
    $region39: #{gemma_forward.1} parent=1 // pred_check_branch
      %87 = sbr.rel (0) target = $region41
    $region40: #{gemma_forward.1} parent=1 // pred_region
      %88 = dma.done [#allocation6], 4096
    $region41: #{gemma_forward.1} parent=1 // pred_fallthru
      _
    // Predicated region
    $region42: #{gemma_forward.1} parent=1 // pred_check
      _
    $region43: #{gemma_forward.1} parent=1 // pred_check_branch
      %90 = sbr.rel (0) target = $region45
    $region44: #{gemma_forward.1} parent=1 // pred_region
      %91 = dma.done [#allocation6], 2048
    $region45: #{gemma_forward.1} parent=1 // pred_fallthru
      _
    // Predicated region
    $region46: #{gemma_forward.1} parent=1 // pred_check
      _
    $region47: #{gemma_forward.1} parent=1 // pred_check_branch
      %93 = sbr.rel (0) target = $region49
    $region48: #{gemma_forward.1} parent=1 // pred_region
      %94 = dma.done [#allocation9], 8192
    $region49: #{gemma_forward.1} parent=1 // pred_fallthru
      _
    // Predicated region
    $region50: #{gemma_forward.1} parent=1 // pred_check
      _
    $region51: #{gemma_forward.1} parent=1 // pred_check_branch
      %96 = sbr.rel (0) target = $region53
    $region52: #{gemma_forward.1} parent=1 // pred_region
      %97 = dma.done [#allocation9], 4096
    $region53: #{gemma_forward.1} parent=1 // pred_fallthru
      _
    %v99 = vld [vmem:[%s0] sm:$0xff]
    %v100 = vlaneseq
    %v101 = vand.u32 %v100, 127
    %v102 = vadd.s32 %v101, 128
    %103 = vset.pattern.permute.xlu0 0
    %104 = vperm.xlu0 %103, %v99
    %v105 = vpop.permute.xlu0 %104
    %vm106 = vcmp.eq.s32.totalorder %v101, %v105
    %vm107 = vcmp.eq.s32.totalorder %v102, %v105
    %v108 = vsel %vm106, 1.0, 0.0
    %v109 = vsel %vm107, 1.0, 0.0
    %v110 = vpack.c.bf16 %v108, %v108
    %v111 = vpack.c.bf16 %v109, %v109
    %v112 = vld [vmem:[#allocation2] sm:$0xf]
    %v113 = vld [vmem:[#allocation2 + $0x4] sm:$0xf]
    %v114 = vld [vmem:[#allocation2 + $0x8] sm:$0xf]
    %v115 = vld [vmem:[#allocation2 + $0xc] sm:$0xf]
    %v116 = vld [vmem:[#allocation2 + $0x10] sm:$0xf]
    %v117 = vld [vmem:[#allocation2 + $0x14] sm:$0xf]
    %v118 = vld [vmem:[#allocation2 + $0x18] sm:$0xf]
    %v119 = vld [vmem:[#allocation2 + $0x1c] sm:$0xf]
    %v120 = vld [vmem:[#allocation2 + $0x20] sm:$0xf]
    %v121 = vld [vmem:[#allocation2 + $0x24] sm:$0xf]
    %v122 = vld [vmem:[#allocation2 + $0x28] sm:$0xf]
    %v123 = vld [vmem:[#allocation2 + $0x2c] sm:$0xf]
    %v124 = vld [vmem:[#allocation2 + $0x30] sm:$0xf]
    %v125 = vld [vmem:[#allocation2 + $0x34] sm:$0xf]
    %v126 = vld [vmem:[#allocation2 + $0x38] sm:$0xf]
    %v127 = vld [vmem:[#allocation2 + $0x3c] sm:$0xf]
    %v128 = vld [vmem:[#allocation2 + $0x40] sm:$0xf]
    %v129 = vld [vmem:[#allocation2 + $0x44] sm:$0xf]
    %v130 = vld [vmem:[#allocation2 + $0x48] sm:$0xf]
    %v131 = vld [vmem:[#allocation2 + $0x4c] sm:$0xf]
    %v132 = vld [vmem:[#allocation2 + $0x50] sm:$0xf]
    %v133 = vld [vmem:[#allocation2 + $0x54] sm:$0xf]
    %v134 = vld [vmem:[#allocation2 + $0x58] sm:$0xf]
    %v135 = vld [vmem:[#allocation2 + $0x5c] sm:$0xf]
    %v136 = vld [vmem:[#allocation2 + $0x60] sm:$0xf]
    %v137 = vld [vmem:[#allocation2 + $0x64] sm:$0xf]
    %v138 = vld [vmem:[#allocation2 + $0x68] sm:$0xf]
    %v139 = vld [vmem:[#allocation2 + $0x6c] sm:$0xf]
    %v140 = vld [vmem:[#allocation2 + $0x70] sm:$0xf]
    %v141 = vld [vmem:[#allocation2 + $0x74] sm:$0xf]
    %v142 = vld [vmem:[#allocation2 + $0x78] sm:$0xf]
    %v143 = vld [vmem:[#allocation2 + $0x7c] sm:$0xf]
    %v176 = vunpack.c.l.b16 %v112
    %v177 = vunpack.c.l.b16 %v113
    %v178 = vunpack.c.l.b16 %v114
    %v179 = vunpack.c.l.b16 %v115
    %v180 = vunpack.c.l.b16 %v116
    %v181 = vunpack.c.l.b16 %v117
    %v182 = vunpack.c.l.b16 %v118
    %v183 = vunpack.c.l.b16 %v119
    %v184 = vunpack.c.l.b16 %v120
    %v185 = vunpack.c.l.b16 %v121
    %v186 = vunpack.c.l.b16 %v122
    %v187 = vunpack.c.l.b16 %v123
    %v188 = vunpack.c.l.b16 %v124
    %v189 = vunpack.c.l.b16 %v125
    %v190 = vunpack.c.l.b16 %v126
    %v191 = vunpack.c.l.b16 %v127
    %v192 = vunpack.c.l.b16 %v128
    %v193 = vunpack.c.l.b16 %v129
    %v194 = vunpack.c.l.b16 %v130
    %v195 = vunpack.c.l.b16 %v131
    %v196 = vunpack.c.l.b16 %v132
    %v197 = vunpack.c.l.b16 %v133
    %v198 = vunpack.c.l.b16 %v134
    %v199 = vunpack.c.l.b16 %v135
    %v200 = vunpack.c.l.b16 %v136
    %v201 = vunpack.c.l.b16 %v137
    %v202 = vunpack.c.l.b16 %v138
    %v203 = vunpack.c.l.b16 %v139
    %v204 = vunpack.c.l.b16 %v140
    %v205 = vunpack.c.l.b16 %v141
    %v206 = vunpack.c.l.b16 %v142
    %v207 = vunpack.c.l.b16 %v143
    %v208 = vpack.c.b16 %v177, %v176
    %v209 = vpack.c.b16 %v179, %v178
    %v210 = vpack.c.b16 %v181, %v180
    %v211 = vpack.c.b16 %v183, %v182
    %v212 = vpack.c.b16 %v185, %v184
    %v213 = vpack.c.b16 %v187, %v186
    %v214 = vpack.c.b16 %v189, %v188
    %v215 = vpack.c.b16 %v191, %v190
    %v216 = vpack.c.b16 %v193, %v192
    %v217 = vpack.c.b16 %v195, %v194
    %v218 = vpack.c.b16 %v197, %v196
    %v219 = vpack.c.b16 %v199, %v198
    %v220 = vpack.c.b16 %v201, %v200
    %v221 = vpack.c.b16 %v203, %v202
    %v222 = vpack.c.b16 %v205, %v204
    %v223 = vpack.c.b16 %v207, %v206
    %240 = vmatprep.subr.bf16.mxu0 0
    %241 = vmatpush1.bf16.msra.mxu0 %v215
    %242 = vmatprep.subr.bf16.mxu0 0
    %243 = vmatpush1.bf16.msra.mxu0 %v214
    %244 = vmatprep.subr.bf16.mxu0 0
    %245 = vmatpush1.bf16.msra.mxu0 %v213
    %246 = vmatprep.subr.bf16.mxu0 0
    %247 = vmatpush1.bf16.msra.mxu0 %v212
    %248 = vmatprep.subr.bf16.mxu0 0
    %249 = vmatpush1.bf16.msra.mxu0 %v211
    %250 = vmatprep.subr.bf16.mxu0 0
    %251 = vmatpush1.bf16.msra.mxu0 %v210
    %252 = vmatprep.subr.bf16.mxu0 0
    %253 = vmatpush1.bf16.msra.mxu0 %v209
    %254 = vmatprep.subr.bf16.mxu0 0
    %255 = vmatpush1.bf16.msra.mxu0 %v208
    %256 = vmatprep.subr.bf16.mxu0 0
    %257 = vmatpush2.bf16.msra.mxu0 %v223
    %258 = vmatprep.subr.bf16.mxu0 0
    %259 = vmatpush2.bf16.msra.mxu0 %v222
    %260 = vmatprep.subr.bf16.mxu0 0
    %261 = vmatpush2.bf16.msra.mxu0 %v221
    %262 = vmatprep.subr.bf16.mxu0 0
    %263 = vmatpush2.bf16.msra.mxu0 %v220
    %264 = vmatprep.subr.bf16.mxu0 0
    %265 = vmatpush2.bf16.msra.mxu0 %v219
    %266 = vmatprep.subr.bf16.mxu0 0
    %267 = vmatpush2.bf16.msra.mxu0 %v218
    %268 = vmatprep.subr.bf16.mxu0 0
    %269 = vmatpush2.bf16.msra.mxu0 %v217
    %270 = vmatprep.subr.bf16.mxu0 0
    %271 = vmatpush2.bf16.msra.mxu0 %v216
    %272 = vmatprep.mubr.bf16.mxu0 %v111
    %273 = vmatmul.mubr.bf16.gmra.mxu0 %v110
    %v274 = vpop.f32.mrf.mxu0
    %v275 = vadd.f32 0.0, %v274
    %v276 = vpop.f32.mrf.mxu0
    %v277 = vpop.f32.mrf.mxu0
    %v278 = vpop.f32.mrf.mxu0
    %279 = vdwg.mxu0
    %v280 = vmul.f32 %v275, 11.313708
    %v281 = vld [vmem:[%s2] sm:$0xff]
    %v282 = vlaneseq
    %v283 = vshrl.u32 %v282, 7
    %vm284 = vcmp.le.s32.totalorder %v101, %v283
    %v285 = vld [vmem:[%s7] sm:$0x1]
    %v286 = vld [vmem:[%s7 + $0x1] sm:$0x1]
    %v287 = vmul.f32 %v280, %v280
    %288 = vadd.xlane.f32.xlu0 %v287
    %v289 = vpop.xlane.xlu0 %288
    %v290 = vrcp.pop 128.0
    %v291 = vmul.f32 %v289, %v290
    %v292 = vadd.f32 %v291, 1e-06
    %v293 = vrsqrt.pop %v292
    %v294 = vmul.f32 %v280, %v293
    %v295 = vadd.f32 %v285, 1.0
    %v296 = vlaneseq
    %v297 = vshrl.u32 %v296, 7
    %v298 = vsub.s32 0, %v297
    %v299 = vrot.slane %v295, %v298
    %v300 = vmul.f32 %v294, %v299
    %v301 = vpack.c.bf16 %v300, %v300
    %v302 = vld [vmem:[#allocation5] sm:$0xff]
    %v303 = vld [vmem:[#allocation5 + $0x8] sm:$0xff]
    %v304 = vld [vmem:[#allocation5 + $0x10] sm:$0xff]
    %v305 = vld [vmem:[#allocation5 + $0x18] sm:$0xff]
    %v306 = vld [vmem:[#allocation5 + $0x20] sm:$0xff]
    %v307 = vld [vmem:[#allocation5 + $0x28] sm:$0xff]
    %v308 = vld [vmem:[#allocation5 + $0x30] sm:$0xff]
    %v309 = vld [vmem:[#allocation5 + $0x38] sm:$0xff]
    %v310 = vld [vmem:[#allocation5 + $0x40] sm:$0xff]
    %v311 = vld [vmem:[#allocation5 + $0x48] sm:$0xff]
    %v312 = vld [vmem:[#allocation5 + $0x50] sm:$0xff]
    %v313 = vld [vmem:[#allocation5 + $0x58] sm:$0xff]
    %v314 = vld [vmem:[#allocation5 + $0x60] sm:$0xff]
    %v315 = vld [vmem:[#allocation5 + $0x68] sm:$0xff]
    %v316 = vld [vmem:[#allocation5 + $0x70] sm:$0xff]
    %v317 = vld [vmem:[#allocation5 + $0x78] sm:$0xff]
    %v334 = vunpack.c.l.b16 %v302
    %v335 = vunpack.c.h.b16 %v302
    %v336 = vunpack.c.l.b16 %v303
    %v337 = vunpack.c.h.b16 %v303
    %v338 = vunpack.c.l.b16 %v304
    %v339 = vunpack.c.h.b16 %v304
    %v340 = vunpack.c.l.b16 %v305
    %v341 = vunpack.c.h.b16 %v305
    %v342 = vunpack.c.l.b16 %v306
    %v343 = vunpack.c.h.b16 %v306
    %v344 = vunpack.c.l.b16 %v307
    %v345 = vunpack.c.h.b16 %v307
    %v346 = vunpack.c.l.b16 %v308
    %v347 = vunpack.c.h.b16 %v308
    %v348 = vunpack.c.l.b16 %v309
    %v349 = vunpack.c.h.b16 %v309
    %v350 = vunpack.c.l.b16 %v310
    %v351 = vunpack.c.h.b16 %v310
    %v352 = vunpack.c.l.b16 %v311
    %v353 = vunpack.c.h.b16 %v311
    %v354 = vunpack.c.l.b16 %v312
    %v355 = vunpack.c.h.b16 %v312
    %v356 = vunpack.c.l.b16 %v313
    %v357 = vunpack.c.h.b16 %v313
    %v358 = vunpack.c.l.b16 %v314
    %v359 = vunpack.c.h.b16 %v314
    %v360 = vunpack.c.l.b16 %v315
    %v361 = vunpack.c.h.b16 %v315
    %v362 = vunpack.c.l.b16 %v316
    %v363 = vunpack.c.h.b16 %v316
    %v364 = vunpack.c.l.b16 %v317
    %v365 = vunpack.c.h.b16 %v317
    %v366 = vpack.c.b16 %v336, %v334
    %v367 = vpack.c.b16 %v337, %v335
    %v368 = vpack.c.b16 %v340, %v338
    %v369 = vpack.c.b16 %v341, %v339
    %v370 = vpack.c.b16 %v344, %v342
    %v371 = vpack.c.b16 %v345, %v343
    %v372 = vpack.c.b16 %v348, %v346
    %v373 = vpack.c.b16 %v349, %v347
    %v374 = vpack.c.b16 %v352, %v350
    %v375 = vpack.c.b16 %v353, %v351
    %v376 = vpack.c.b16 %v356, %v354
    %v377 = vpack.c.b16 %v357, %v355
    %v378 = vpack.c.b16 %v360, %v358
    %v379 = vpack.c.b16 %v361, %v359
    %v380 = vpack.c.b16 %v364, %v362
    %v381 = vpack.c.b16 %v365, %v363
    %398 = vmatprep.subr.bf16.mxu0 %v381
    %399 = vmatpush1.bf16.msra.mxu0 %v380
    %400 = vmatprep.subr.bf16.mxu0 %v379
    %401 = vmatpush1.bf16.msra.mxu0 %v378
    %402 = vmatprep.subr.bf16.mxu0 %v377
    %403 = vmatpush1.bf16.msra.mxu0 %v376
    %404 = vmatprep.subr.bf16.mxu0 %v375
    %405 = vmatpush1.bf16.msra.mxu0 %v374
    %406 = vmatprep.subr.bf16.mxu0 %v373
    %407 = vmatpush1.bf16.msra.mxu0 %v372
    %408 = vmatprep.subr.bf16.mxu0 %v371
    %409 = vmatpush1.bf16.msra.mxu0 %v370
    %410 = vmatprep.subr.bf16.mxu0 %v369
    %411 = vmatpush1.bf16.msra.mxu0 %v368
    %412 = vmatprep.subr.bf16.mxu0 %v367
    %413 = vmatpush1.bf16.msra.mxu0 %v366
    %414 = vmatprep.subr.bf16.mxu0 0
    %415 = vmatpush2.bf16.msra.mxu0 0
    %416 = vmatprep.subr.bf16.mxu0 0
    %417 = vmatpush2.bf16.msra.mxu0 0
    %418 = vmatprep.subr.bf16.mxu0 0
    %419 = vmatpush2.bf16.msra.mxu0 0
    %420 = vmatprep.subr.bf16.mxu0 0
    %421 = vmatpush2.bf16.msra.mxu0 0
    %422 = vmatprep.subr.bf16.mxu0 0
    %423 = vmatpush2.bf16.msra.mxu0 0
    %424 = vmatprep.subr.bf16.mxu0 0
    %425 = vmatpush2.bf16.msra.mxu0 0
    %426 = vmatprep.subr.bf16.mxu0 0
    %427 = vmatpush2.bf16.msra.mxu0 0
    %428 = vmatprep.subr.bf16.mxu0 0
    %429 = vmatpush2.bf16.msra.mxu0 0
    %430 = vmatprep.mubr.bf16.mxu0 0
    %431 = vmatmul.mubr.bf16.gmra.mxu0 %v301
    %v432 = vpop.f32.mrf.mxu0
    %v433 = vadd.f32 0.0, %v432
    %v434 = vpop.f32.mrf.mxu0
    %v435 = vadd.f32 0.0, %v434
    %v436 = vpop.f32.mrf.mxu0
    %v437 = vpop.f32.mrf.mxu0
    %438 = vdwg.mxu0
    %440 = vrot.lane.b32.xlu0 %v435, 96
    %v441 = vpop.permute.xlu0 %440
    %443 = vrot.lane.b32.xlu0 %v435, 32
    %v444 = vpop.permute.xlu0 %443
    %vm446 = vcmask 261120
    %v447 = vsel %vm446, %v441, %v444
    %v448 = vmul.f32 %v435, %v281
    %450 = vrot.lane.b32.xlu0 %v281, 64
    %v451 = vpop.permute.xlu0 %450
    %v453 = vmul.f32 %v447, %v451
    %v454 = vadd.f32 %v448, %v453
    %v455 = vpack.c.bf16 %v435, %v435
    %457 = vrot.lane.b32.xlu0 %v433, 96
    %v458 = vpop.permute.xlu0 %457
    %460 = vrot.lane.b32.xlu0 %v433, 32
    %v461 = vpop.permute.xlu0 %460
    %v463 = vsel %vm446, %v458, %v461
    %v464 = vmul.f32 %v433, %v281
    %v465 = vmul.f32 %v463, %v451
    %v466 = vadd.f32 %v464, %v465
    %vm467 = vcmask 523264
    %v469 = vsel %vm467, %v466, 0
    %v472 = vsel %vm467, %v454, 0
    %474 = vmatprep.subr.mxu0 0.0
    %475 = vmatpush1.xpose.msra.mxu0 0.0
    %476 = vmatprep.subr.mxu0 0.0
    %477 = vmatpush1.xpose.msra.mxu0 0.0
    %478 = vmatprep.subr.mxu0 0.0
    %479 = vmatpush1.xpose.msra.mxu0 0.0
    %480 = vmatprep.subr.mxu0 0.0
    %481 = vmatpush1.xpose.msra.mxu0 0.0
    %482 = vmatprep.subr.mxu0 0.0
    %483 = vmatpush1.xpose.msra.mxu0 0.0
    %484 = vmatprep.subr.mxu0 0.0
    %485 = vmatpush1.xpose.msra.mxu0 0.0
    %486 = vmatprep.subr.mxu0 0.0
    %487 = vmatpush1.xpose.msra.mxu0 0.0
    %488 = vmatprep.subr.mxu0 0.0
    %489 = vmatpush1.xpose.msra.mxu0 0.0
    %490 = vmatprep.subr.mxu0 0.0
    %491 = vmatpush1.xpose.msra.mxu0 0.0
    %492 = vmatprep.subr.mxu0 0.0
    %493 = vmatpush1.xpose.msra.mxu0 0.0
    %494 = vmatprep.subr.mxu0 0.0
    %495 = vmatpush1.xpose.msra.mxu0 0.0
    %496 = vmatprep.subr.mxu0 0.0
    %497 = vmatpush1.xpose.msra.mxu0 0.0
    %498 = vmatprep.subr.mxu0 0.0
    %499 = vmatpush1.xpose.msra.mxu0 0.0
    %500 = vmatprep.subr.mxu0 0.0
    %501 = vmatpush1.xpose.msra.mxu0 0.0
    %502 = vmatprep.subr.mxu0 0.0
    %503 = vmatpush1.xpose.msra.mxu0 0.0
    %504 = vmatprep.subr.mxu0 0.0
    %505 = vmatpush1.xpose.msra.mxu0 %v472
    %506 = vmatprep.subr.mxu0 0.0
    %507 = vmatpush2.xpose.msra.mxu0 0.0
    %508 = vmatprep.subr.mxu0 0.0
    %509 = vmatpush2.xpose.msra.mxu0 0.0
    %510 = vmatprep.subr.mxu0 0.0
    %511 = vmatpush2.xpose.msra.mxu0 0.0
    %512 = vmatprep.subr.mxu0 0.0
    %513 = vmatpush2.xpose.msra.mxu0 0.0
    %514 = vmatprep.subr.mxu0 0.0
    %515 = vmatpush2.xpose.msra.mxu0 0.0
    %516 = vmatprep.subr.mxu0 0.0
    %517 = vmatpush2.xpose.msra.mxu0 0.0
    %518 = vmatprep.subr.mxu0 0.0
    %519 = vmatpush2.xpose.msra.mxu0 0.0
    %520 = vmatprep.subr.mxu0 0.0
    %521 = vmatpush2.xpose.msra.mxu0 0.0
    %522 = vmatprep.subr.mxu0 0.0
    %523 = vmatpush2.xpose.msra.mxu0 0.0
    %524 = vmatprep.subr.mxu0 0.0
    %525 = vmatpush2.xpose.msra.mxu0 0.0
    %526 = vmatprep.subr.mxu0 0.0
    %527 = vmatpush2.xpose.msra.mxu0 0.0
    %528 = vmatprep.subr.mxu0 0.0
    %529 = vmatpush2.xpose.msra.mxu0 0.0
    %530 = vmatprep.subr.mxu0 0.0
    %531 = vmatpush2.xpose.msra.mxu0 0.0
    %532 = vmatprep.subr.mxu0 0.0
    %533 = vmatpush2.xpose.msra.mxu0 0.0
    %534 = vmatprep.subr.mxu0 0.0
    %535 = vmatpush2.xpose.msra.mxu0 0.0
    %536 = vmatprep.subr.mxu0 0.0
    %537 = vmatpush2.xpose.msra.mxu0 0.0
    %538 = vmatprep.mubr.f32.mxu0 0.0
    %539 = vmatmul.mubr.f32.gmra.mxu0 %v469
    %v540 = vpop.f32.mrf.mxu0
    %v541 = vadd.f32 0.0, %v540
    %v542 = vpop.f32.mrf.mxu0
    %543 = vdwg.mxu0
    %v544 = vmul.f32 %v541, 0.125
    %v545 = vsel %vm284, %v544, -1e+30
    %vm546 = vcmask 64512
    %v547 = vsel %vm546, %v545, -inf
    %548 = vmax.xlane.f32.xlu0 %v547
    %v549 = vpop.xlane.xlu0 %548
    %v550 = vsub.f32 %v545, %v549
    %v551 = vmul.f32 %v550, 1.442695
    %v552 = vpow.pop %v551
    %v553 = vsel %vm546, %v552, 0.0
    %554 = vadd.xlane.f32.xlu0 %v553
    %v555 = vpop.xlane.xlu0 %554
    %v556 = vrcp.pop %v555
    %v557 = vmul.f32 %v552, %v556
    %v558 = vpack.c.bf16 %v557, %v557
    %560 = vrot.lane.b32.xlu0 %v455, 64
    %v561 = vpop.permute.xlu0 %560
    %v563 = vsel %vm546, %v558, 0
    %vm565 = vcmask 1043456
    %v567 = vsel %vm565, %v561, 0
    %569 = vmatprep.subr.bf16.mxu0 0
    %570 = vmatpush1.bf16.msra.mxu0 0
    %571 = vmatprep.subr.bf16.mxu0 0
    %572 = vmatpush1.bf16.msra.mxu0 0
    %573 = vmatprep.subr.bf16.mxu0 0
    %574 = vmatpush1.bf16.msra.mxu0 0
    %575 = vmatprep.subr.bf16.mxu0 0
    %576 = vmatpush1.bf16.msra.mxu0 0
    %577 = vmatprep.subr.bf16.mxu0 0
    %578 = vmatpush1.bf16.msra.mxu0 0
    %579 = vmatprep.subr.bf16.mxu0 0
    %580 = vmatpush1.bf16.msra.mxu0 0
    %581 = vmatprep.subr.bf16.mxu0 0
    %582 = vmatpush1.bf16.msra.mxu0 0
    %583 = vmatprep.subr.bf16.mxu0 0
    %584 = vmatpush1.bf16.msra.mxu0 %v567
    %585 = vmatprep.subr.bf16.mxu0 0
    %586 = vmatpush2.bf16.msra.mxu0 0
    %587 = vmatprep.subr.bf16.mxu0 0
    %588 = vmatpush2.bf16.msra.mxu0 0
    %589 = vmatprep.subr.bf16.mxu0 0
    %590 = vmatpush2.bf16.msra.mxu0 0
    %591 = vmatprep.subr.bf16.mxu0 0
    %592 = vmatpush2.bf16.msra.mxu0 0
    %593 = vmatprep.subr.bf16.mxu0 0
    %594 = vmatpush2.bf16.msra.mxu0 0
    %595 = vmatprep.subr.bf16.mxu0 0
    %596 = vmatpush2.bf16.msra.mxu0 0
    %597 = vmatprep.subr.bf16.mxu0 0
    %598 = vmatpush2.bf16.msra.mxu0 0
    %599 = vmatprep.subr.bf16.mxu0 0
    %600 = vmatpush2.bf16.msra.mxu0 0
    %601 = vmatprep.mubr.bf16.mxu0 0
    %602 = vmatmul.mubr.bf16.gmra.mxu0 %v563
    %v603 = vpop.f32.mrf.mxu0
    %v604 = vadd.f32 0.0, %v603
    %v605 = vpop.f32.mrf.mxu0
    %v606 = vpop.f32.mrf.mxu0
    %v607 = vpop.f32.mrf.mxu0
    %608 = vdwg.mxu0
    %v609 = vsel %vm446, %v461, %v458
    %v610 = vmul.f32 %v433, %v451
    %v611 = vmul.f32 %v609, %v451
    %613 = vrot.lane.b32.xlu0 %v611, 64
    %v614 = vpop.permute.xlu0 %613
    %v616 = vadd.f32 %v610, %v614
    %618 = vrot.lane.b32.xlu0 %v616, 64
    %v619 = vpop.permute.xlu0 %618
    %v620 = vsel %vm467, %v619, 0
    %622 = vmatprep.subr.mxu0 0.0
    %623 = vmatpush1.xpose.msra.mxu0 0.0
    %624 = vmatprep.subr.mxu0 0.0
    %625 = vmatpush1.xpose.msra.mxu0 0.0
    %626 = vmatprep.subr.mxu0 0.0
    %627 = vmatpush1.xpose.msra.mxu0 0.0
    %628 = vmatprep.subr.mxu0 0.0
    %629 = vmatpush1.xpose.msra.mxu0 0.0
    %630 = vmatprep.subr.mxu0 0.0
    %631 = vmatpush1.xpose.msra.mxu0 0.0
    %632 = vmatprep.subr.mxu0 0.0
    %633 = vmatpush1.xpose.msra.mxu0 0.0
    %634 = vmatprep.subr.mxu0 0.0
    %635 = vmatpush1.xpose.msra.mxu0 0.0
    %636 = vmatprep.subr.mxu0 0.0
    %637 = vmatpush1.xpose.msra.mxu0 0.0
    %638 = vmatprep.subr.mxu0 0.0
    %639 = vmatpush1.xpose.msra.mxu0 0.0
    %640 = vmatprep.subr.mxu0 0.0
    %641 = vmatpush1.xpose.msra.mxu0 0.0
    %642 = vmatprep.subr.mxu0 0.0
    %643 = vmatpush1.xpose.msra.mxu0 0.0
    %644 = vmatprep.subr.mxu0 0.0
    %645 = vmatpush1.xpose.msra.mxu0 0.0
    %646 = vmatprep.subr.mxu0 0.0
    %647 = vmatpush1.xpose.msra.mxu0 0.0
    %648 = vmatprep.subr.mxu0 0.0
    %649 = vmatpush1.xpose.msra.mxu0 0.0
    %650 = vmatprep.subr.mxu0 0.0
    %651 = vmatpush1.xpose.msra.mxu0 0.0
    %652 = vmatprep.subr.mxu0 0.0
    %653 = vmatpush1.xpose.msra.mxu0 %v472
    %654 = vmatprep.subr.mxu0 0.0
    %655 = vmatpush2.xpose.msra.mxu0 0.0
    %656 = vmatprep.subr.mxu0 0.0
    %657 = vmatpush2.xpose.msra.mxu0 0.0
    %658 = vmatprep.subr.mxu0 0.0
    %659 = vmatpush2.xpose.msra.mxu0 0.0
    %660 = vmatprep.subr.mxu0 0.0
    %661 = vmatpush2.xpose.msra.mxu0 0.0
    %662 = vmatprep.subr.mxu0 0.0
    %663 = vmatpush2.xpose.msra.mxu0 0.0
    %664 = vmatprep.subr.mxu0 0.0
    %665 = vmatpush2.xpose.msra.mxu0 0.0
    %666 = vmatprep.subr.mxu0 0.0
    %667 = vmatpush2.xpose.msra.mxu0 0.0
    %668 = vmatprep.subr.mxu0 0.0
    %669 = vmatpush2.xpose.msra.mxu0 0.0
    %670 = vmatprep.subr.mxu0 0.0
    %671 = vmatpush2.xpose.msra.mxu0 0.0
    %672 = vmatprep.subr.mxu0 0.0
    %673 = vmatpush2.xpose.msra.mxu0 0.0
    %674 = vmatprep.subr.mxu0 0.0
    %675 = vmatpush2.xpose.msra.mxu0 0.0
    %676 = vmatprep.subr.mxu0 0.0
    %677 = vmatpush2.xpose.msra.mxu0 0.0
    %678 = vmatprep.subr.mxu0 0.0
    %679 = vmatpush2.xpose.msra.mxu0 0.0
    %680 = vmatprep.subr.mxu0 0.0
    %681 = vmatpush2.xpose.msra.mxu0 0.0
    %682 = vmatprep.subr.mxu0 0.0
    %683 = vmatpush2.xpose.msra.mxu0 0.0
    %684 = vmatprep.subr.mxu0 0.0
    %685 = vmatpush2.xpose.msra.mxu0 0.0
    %686 = vmatprep.mubr.f32.mxu0 0.0
    %687 = vmatmul.mubr.f32.gmra.mxu0 %v620
    %v688 = vpop.f32.mrf.mxu0
    %v689 = vadd.f32 0.0, %v688
    %v690 = vpop.f32.mrf.mxu0
    %691 = vdwg.mxu0
    %v692 = vmul.f32 %v689, 0.125
    %v693 = vsel %vm284, %v692, -1e+30
    %v694 = vsel %vm546, %v693, -inf
    %695 = vmax.xlane.f32.xlu0 %v694
    %v696 = vpop.xlane.xlu0 %695
    %v697 = vsub.f32 %v693, %v696
    %v698 = vmul.f32 %v697, 1.442695
    %v699 = vpow.pop %v698
    %v700 = vsel %vm546, %v699, 0.0
    %701 = vadd.xlane.f32.xlu0 %v700
    %v702 = vpop.xlane.xlu0 %701
    %v703 = vrcp.pop %v702
    %v704 = vmul.f32 %v699, %v703
    %v705 = vpack.c.bf16 %v704, %v704
    %v707 = vsel %vm546, %v705, 0
    %709 = vmatprep.subr.bf16.mxu0 0
    %710 = vmatpush1.bf16.msra.mxu0 0
    %711 = vmatprep.subr.bf16.mxu0 0
    %712 = vmatpush1.bf16.msra.mxu0 0
    %713 = vmatprep.subr.bf16.mxu0 0
    %714 = vmatpush1.bf16.msra.mxu0 0
    %715 = vmatprep.subr.bf16.mxu0 0
    %716 = vmatpush1.bf16.msra.mxu0 0
    %717 = vmatprep.subr.bf16.mxu0 0
    %718 = vmatpush1.bf16.msra.mxu0 0
    %719 = vmatprep.subr.bf16.mxu0 0
    %720 = vmatpush1.bf16.msra.mxu0 0
    %721 = vmatprep.subr.bf16.mxu0 0
    %722 = vmatpush1.bf16.msra.mxu0 0
    %723 = vmatprep.subr.bf16.mxu0 0
    %724 = vmatpush1.bf16.msra.mxu0 %v567
    %725 = vmatprep.subr.bf16.mxu0 0
    %726 = vmatpush2.bf16.msra.mxu0 0
    %727 = vmatprep.subr.bf16.mxu0 0
    %728 = vmatpush2.bf16.msra.mxu0 0
    %729 = vmatprep.subr.bf16.mxu0 0
    %730 = vmatpush2.bf16.msra.mxu0 0
    %731 = vmatprep.subr.bf16.mxu0 0
    %732 = vmatpush2.bf16.msra.mxu0 0
    %733 = vmatprep.subr.bf16.mxu0 0
    %734 = vmatpush2.bf16.msra.mxu0 0
    %735 = vmatprep.subr.bf16.mxu0 0
    %736 = vmatpush2.bf16.msra.mxu0 0
    %737 = vmatprep.subr.bf16.mxu0 0
    %738 = vmatpush2.bf16.msra.mxu0 0
    %739 = vmatprep.subr.bf16.mxu0 0
    %740 = vmatpush2.bf16.msra.mxu0 0
    %741 = vmatprep.mubr.bf16.mxu0 0
    %742 = vmatmul.mubr.bf16.gmra.mxu0 %v707
    %v743 = vpop.f32.mrf.mxu0
    %v744 = vadd.f32 0.0, %v743
    %v745 = vpop.f32.mrf.mxu0
    %v746 = vpop.f32.mrf.mxu0
    %v747 = vpop.f32.mrf.mxu0
    %748 = vdwg.mxu0
    %750 = vrot.lane.b32.xlu0 %v744, 64
    %v751 = vpop.permute.xlu0 %750
    %v753 = vsel %vm467, %v604, %v751
    %v754 = vpack.c.bf16 %v753, %v753
    %v755 = vld [vmem:[#allocation7] sm:$0xf]
    %v756 = vld [vmem:[#allocation7 + $0x4] sm:$0xf]
    %v757 = vld [vmem:[#allocation7 + $0x8] sm:$0xf]
    %v758 = vld [vmem:[#allocation7 + $0xc] sm:$0xf]
    %v759 = vld [vmem:[#allocation7 + $0x10] sm:$0xf]
    %v760 = vld [vmem:[#allocation7 + $0x14] sm:$0xf]
    %v761 = vld [vmem:[#allocation7 + $0x18] sm:$0xf]
    %v762 = vld [vmem:[#allocation7 + $0x1c] sm:$0xf]
    %v763 = vld [vmem:[#allocation7 + $0x20] sm:$0xf]
    %v764 = vld [vmem:[#allocation7 + $0x24] sm:$0xf]
    %v765 = vld [vmem:[#allocation7 + $0x28] sm:$0xf]
    %v766 = vld [vmem:[#allocation7 + $0x2c] sm:$0xf]
    %v767 = vld [vmem:[#allocation7 + $0x30] sm:$0xf]
    %v768 = vld [vmem:[#allocation7 + $0x34] sm:$0xf]
    %v769 = vld [vmem:[#allocation7 + $0x38] sm:$0xf]
    %v770 = vld [vmem:[#allocation7 + $0x3c] sm:$0xf]
    %v787 = vunpack.c.l.b16 %v755
    %v788 = vunpack.c.l.b16 %v756
    %v789 = vunpack.c.l.b16 %v757
    %v790 = vunpack.c.l.b16 %v758
    %v791 = vunpack.c.l.b16 %v759
    %v792 = vunpack.c.l.b16 %v760
    %v793 = vunpack.c.l.b16 %v761
    %v794 = vunpack.c.l.b16 %v762
    %v795 = vunpack.c.l.b16 %v763
    %v796 = vunpack.c.l.b16 %v764
    %v797 = vunpack.c.l.b16 %v765
    %v798 = vunpack.c.l.b16 %v766
    %v799 = vunpack.c.l.b16 %v767
    %v800 = vunpack.c.l.b16 %v768
    %v801 = vunpack.c.l.b16 %v769
    %v802 = vunpack.c.l.b16 %v770
    %v803 = vpack.c.b16 %v788, %v787
    %v804 = vpack.c.b16 %v790, %v789
    %v805 = vpack.c.b16 %v792, %v791
    %v806 = vpack.c.b16 %v794, %v793
    %v807 = vpack.c.b16 %v796, %v795
    %v808 = vpack.c.b16 %v798, %v797
    %v809 = vpack.c.b16 %v800, %v799
    %v810 = vpack.c.b16 %v802, %v801
    %819 = vmatprep.subr.bf16.mxu0 0
    %820 = vmatpush1.bf16.msra.mxu0 %v810
    %821 = vmatprep.subr.bf16.mxu0 0
    %822 = vmatpush1.bf16.msra.mxu0 %v809
    %823 = vmatprep.subr.bf16.mxu0 0
    %824 = vmatpush1.bf16.msra.mxu0 %v808
    %825 = vmatprep.subr.bf16.mxu0 0
    %826 = vmatpush1.bf16.msra.mxu0 %v807
    %827 = vmatprep.subr.bf16.mxu0 0
    %828 = vmatpush1.bf16.msra.mxu0 %v806
    %829 = vmatprep.subr.bf16.mxu0 0
    %830 = vmatpush1.bf16.msra.mxu0 %v805
    %831 = vmatprep.subr.bf16.mxu0 0
    %832 = vmatpush1.bf16.msra.mxu0 %v804
    %833 = vmatprep.subr.bf16.mxu0 0
    %834 = vmatpush1.bf16.msra.mxu0 %v803
    %835 = vmatprep.subr.bf16.mxu0 0
    %836 = vmatpush2.bf16.msra.mxu0 0
    %837 = vmatprep.subr.bf16.mxu0 0
    %838 = vmatpush2.bf16.msra.mxu0 0
    %839 = vmatprep.subr.bf16.mxu0 0
    %840 = vmatpush2.bf16.msra.mxu0 0
    %841 = vmatprep.subr.bf16.mxu0 0
    %842 = vmatpush2.bf16.msra.mxu0 0
    %843 = vmatprep.subr.bf16.mxu0 0
    %844 = vmatpush2.bf16.msra.mxu0 0
    %845 = vmatprep.subr.bf16.mxu0 0
    %846 = vmatpush2.bf16.msra.mxu0 0
    %847 = vmatprep.subr.bf16.mxu0 0
    %848 = vmatpush2.bf16.msra.mxu0 0
    %849 = vmatprep.subr.bf16.mxu0 0
    %850 = vmatpush2.bf16.msra.mxu0 0
    %851 = vmatprep.mubr.bf16.mxu0 0
    %852 = vmatmul.mubr.bf16.gmra.mxu0 %v754
    %v853 = vpop.f32.mrf.mxu0
    %v854 = vadd.f32 %v280, %v853
    %v855 = vpop.f32.mrf.mxu0
    %v856 = vpop.f32.mrf.mxu0
    %v857 = vpop.f32.mrf.mxu0
    %858 = vdwg.mxu0
    %v859 = vmul.f32 %v854, %v854
    %860 = vadd.xlane.f32.xlu0 %v859
    %v861 = vpop.xlane.xlu0 %860
    %v862 = vmul.f32 %v861, %v290
    %v863 = vadd.f32 %v862, 1e-06
    %v864 = vrsqrt.pop %v863
    %v865 = vmul.f32 %v854, %v864
    %v866 = vadd.f32 %v286, 1.0
    %v867 = vlaneseq
    %v868 = vshrl.u32 %v867, 7
    %v869 = vsub.s32 0, %v868
    %v870 = vrot.slane %v866, %v869
    %v871 = vmul.f32 %v865, %v870
    %v872 = vpack.c.bf16 %v871, %v871
    %v873 = vld [vmem:[#allocation8] sm:$0xff]
    %v874 = vld [vmem:[#allocation8 + $0x8] sm:$0xff]
    %v875 = vld [vmem:[#allocation8 + $0x10] sm:$0xff]
    %v876 = vld [vmem:[#allocation8 + $0x18] sm:$0xff]
    %v877 = vld [vmem:[#allocation8 + $0x20] sm:$0xff]
    %v878 = vld [vmem:[#allocation8 + $0x28] sm:$0xff]
    %v879 = vld [vmem:[#allocation8 + $0x30] sm:$0xff]
    %v880 = vld [vmem:[#allocation8 + $0x38] sm:$0xff]
    %v881 = vld [vmem:[#allocation8 + $0x40] sm:$0xff]
    %v882 = vld [vmem:[#allocation8 + $0x48] sm:$0xff]
    %v883 = vld [vmem:[#allocation8 + $0x50] sm:$0xff]
    %v884 = vld [vmem:[#allocation8 + $0x58] sm:$0xff]
    %v885 = vld [vmem:[#allocation8 + $0x60] sm:$0xff]
    %v886 = vld [vmem:[#allocation8 + $0x68] sm:$0xff]
    %v887 = vld [vmem:[#allocation8 + $0x70] sm:$0xff]
    %v888 = vld [vmem:[#allocation8 + $0x78] sm:$0xff]
    %v889 = vld [vmem:[#allocation8 + $0x80] sm:$0xff]
    %v890 = vld [vmem:[#allocation8 + $0x88] sm:$0xff]
    %v891 = vld [vmem:[#allocation8 + $0x90] sm:$0xff]
    %v892 = vld [vmem:[#allocation8 + $0x98] sm:$0xff]
    %v893 = vld [vmem:[#allocation8 + $0xa0] sm:$0xff]
    %v894 = vld [vmem:[#allocation8 + $0xa8] sm:$0xff]
    %v895 = vld [vmem:[#allocation8 + $0xb0] sm:$0xff]
    %v896 = vld [vmem:[#allocation8 + $0xb8] sm:$0xff]
    %v897 = vld [vmem:[#allocation8 + $0xc0] sm:$0xff]
    %v898 = vld [vmem:[#allocation8 + $0xc8] sm:$0xff]
    %v899 = vld [vmem:[#allocation8 + $0xd0] sm:$0xff]
    %v900 = vld [vmem:[#allocation8 + $0xd8] sm:$0xff]
    %v901 = vld [vmem:[#allocation8 + $0xe0] sm:$0xff]
    %v902 = vld [vmem:[#allocation8 + $0xe8] sm:$0xff]
    %v903 = vld [vmem:[#allocation8 + $0xf0] sm:$0xff]
    %v904 = vld [vmem:[#allocation8 + $0xf8] sm:$0xff]
    %v937 = vunpack.c.l.b16 %v873
    %v938 = vunpack.c.h.b16 %v873
    %v939 = vunpack.c.l.b16 %v874
    %v940 = vunpack.c.h.b16 %v874
    %v941 = vunpack.c.l.b16 %v875
    %v942 = vunpack.c.h.b16 %v875
    %v943 = vunpack.c.l.b16 %v876
    %v944 = vunpack.c.h.b16 %v876
    %v945 = vunpack.c.l.b16 %v877
    %v946 = vunpack.c.h.b16 %v877
    %v947 = vunpack.c.l.b16 %v878
    %v948 = vunpack.c.h.b16 %v878
    %v949 = vunpack.c.l.b16 %v879
    %v950 = vunpack.c.h.b16 %v879
    %v951 = vunpack.c.l.b16 %v880
    %v952 = vunpack.c.h.b16 %v880
    %v953 = vunpack.c.l.b16 %v881
    %v954 = vunpack.c.h.b16 %v881
    %v955 = vunpack.c.l.b16 %v882
    %v956 = vunpack.c.h.b16 %v882
    %v957 = vunpack.c.l.b16 %v883
    %v958 = vunpack.c.h.b16 %v883
    %v959 = vunpack.c.l.b16 %v884
    %v960 = vunpack.c.h.b16 %v884
    %v961 = vunpack.c.l.b16 %v885
    %v962 = vunpack.c.h.b16 %v885
    %v963 = vunpack.c.l.b16 %v886
    %v964 = vunpack.c.h.b16 %v886
    %v965 = vunpack.c.l.b16 %v887
    %v966 = vunpack.c.h.b16 %v887
    %v967 = vunpack.c.l.b16 %v888
    %v968 = vunpack.c.h.b16 %v888
    %v969 = vunpack.c.l.b16 %v889
    %v970 = vunpack.c.h.b16 %v889
    %v971 = vunpack.c.l.b16 %v890
    %v972 = vunpack.c.h.b16 %v890
    %v973 = vunpack.c.l.b16 %v891
    %v974 = vunpack.c.h.b16 %v891
    %v975 = vunpack.c.l.b16 %v892
    %v976 = vunpack.c.h.b16 %v892
    %v977 = vunpack.c.l.b16 %v893
    %v978 = vunpack.c.h.b16 %v893
    %v979 = vunpack.c.l.b16 %v894
    %v980 = vunpack.c.h.b16 %v894
    %v981 = vunpack.c.l.b16 %v895
    %v982 = vunpack.c.h.b16 %v895
    %v983 = vunpack.c.l.b16 %v896
    %v984 = vunpack.c.h.b16 %v896
    %v985 = vunpack.c.l.b16 %v897
    %v986 = vunpack.c.h.b16 %v897
    %v987 = vunpack.c.l.b16 %v898
    %v988 = vunpack.c.h.b16 %v898
    %v989 = vunpack.c.l.b16 %v899
    %v990 = vunpack.c.h.b16 %v899
    %v991 = vunpack.c.l.b16 %v900
    %v992 = vunpack.c.h.b16 %v900
    %v993 = vunpack.c.l.b16 %v901
    %v994 = vunpack.c.h.b16 %v901
    %v995 = vunpack.c.l.b16 %v902
    %v996 = vunpack.c.h.b16 %v902
    %v997 = vunpack.c.l.b16 %v903
    %v998 = vunpack.c.h.b16 %v903
    %v999 = vunpack.c.l.b16 %v904
    %v1000 = vunpack.c.h.b16 %v904
    %v1001 = vpack.c.b16 %v941, %v937
    %v1002 = vpack.c.b16 %v942, %v938
    %v1003 = vpack.c.b16 %v943, %v939
    %v1004 = vpack.c.b16 %v944, %v940
    %v1005 = vpack.c.b16 %v949, %v945
    %v1006 = vpack.c.b16 %v950, %v946
    %v1007 = vpack.c.b16 %v951, %v947
    %v1008 = vpack.c.b16 %v952, %v948
    %v1009 = vpack.c.b16 %v957, %v953
    %v1010 = vpack.c.b16 %v958, %v954
    %v1011 = vpack.c.b16 %v959, %v955
    %v1012 = vpack.c.b16 %v960, %v956
    %v1013 = vpack.c.b16 %v965, %v961
    %v1014 = vpack.c.b16 %v966, %v962
    %v1015 = vpack.c.b16 %v967, %v963
    %v1016 = vpack.c.b16 %v968, %v964
    %v1017 = vpack.c.b16 %v973, %v969
    %v1018 = vpack.c.b16 %v974, %v970
    %v1019 = vpack.c.b16 %v975, %v971
    %v1020 = vpack.c.b16 %v976, %v972
    %v1021 = vpack.c.b16 %v981, %v977
    %v1022 = vpack.c.b16 %v982, %v978
    %v1023 = vpack.c.b16 %v983, %v979
    %v1024 = vpack.c.b16 %v984, %v980
    %v1025 = vpack.c.b16 %v989, %v985
    %v1026 = vpack.c.b16 %v990, %v986
    %v1027 = vpack.c.b16 %v991, %v987
    %v1028 = vpack.c.b16 %v992, %v988
    %v1029 = vpack.c.b16 %v997, %v993
    %v1030 = vpack.c.b16 %v998, %v994
    %v1031 = vpack.c.b16 %v999, %v995
    %v1032 = vpack.c.b16 %v1000, %v996
    %1065 = vmatprep.subr.bf16.mxu0 %v1030
    %1066 = vmatpush1.bf16.msra.mxu0 %v1029
    %1067 = vmatprep.subr.bf16.mxu0 %v1026
    %1068 = vmatpush1.bf16.msra.mxu0 %v1025
    %1069 = vmatprep.subr.bf16.mxu0 %v1022
    %1070 = vmatpush1.bf16.msra.mxu0 %v1021
    %1071 = vmatprep.subr.bf16.mxu0 %v1018
    %1072 = vmatpush1.bf16.msra.mxu0 %v1017
    %1073 = vmatprep.subr.bf16.mxu0 %v1014
    %1074 = vmatpush1.bf16.msra.mxu0 %v1013
    %1075 = vmatprep.subr.bf16.mxu0 %v1010
    %1076 = vmatpush1.bf16.msra.mxu0 %v1009
    %1077 = vmatprep.subr.bf16.mxu0 %v1006
    %1078 = vmatpush1.bf16.msra.mxu0 %v1005
    %1079 = vmatprep.subr.bf16.mxu0 %v1002
    %1080 = vmatpush1.bf16.msra.mxu0 %v1001
    %1081 = vmatprep.subr.bf16.mxu0 0
    %1082 = vmatpush2.bf16.msra.mxu0 0
    %1083 = vmatprep.subr.bf16.mxu0 0
    %1084 = vmatpush2.bf16.msra.mxu0 0
    %1085 = vmatprep.subr.bf16.mxu0 0
    %1086 = vmatpush2.bf16.msra.mxu0 0
    %1087 = vmatprep.subr.bf16.mxu0 0
    %1088 = vmatpush2.bf16.msra.mxu0 0
    %1089 = vmatprep.subr.bf16.mxu0 0
    %1090 = vmatpush2.bf16.msra.mxu0 0
    %1091 = vmatprep.subr.bf16.mxu0 0
    %1092 = vmatpush2.bf16.msra.mxu0 0
    %1093 = vmatprep.subr.bf16.mxu0 0
    %1094 = vmatpush2.bf16.msra.mxu0 0
    %1095 = vmatprep.subr.bf16.mxu0 0
    %1096 = vmatpush2.bf16.msra.mxu0 0
    %1097 = vmatprep.mubr.bf16.mxu0 0
    %1098 = vmatmul.mubr.bf16.gmra.mxu0 %v872
    %v1099 = vpop.f32.mrf.mxu0
    %v1100 = vadd.f32 0.0, %v1099
    %v1101 = vpop.f32.mrf.mxu0
    %v1102 = vadd.f32 0.0, %v1101
    %v1103 = vpop.f32.mrf.mxu0
    %v1104 = vpop.f32.mrf.mxu0
    %1105 = vdwg.mxu0
    %1106 = vmatprep.subr.bf16.mxu0 %v1032
    %1107 = vmatpush1.bf16.msra.mxu0 %v1031
    %1108 = vmatprep.subr.bf16.mxu0 %v1028
    %1109 = vmatpush1.bf16.msra.mxu0 %v1027
    %1110 = vmatprep.subr.bf16.mxu0 %v1024
    %1111 = vmatpush1.bf16.msra.mxu0 %v1023
    %1112 = vmatprep.subr.bf16.mxu0 %v1020
    %1113 = vmatpush1.bf16.msra.mxu0 %v1019
    %1114 = vmatprep.subr.bf16.mxu0 %v1016
    %1115 = vmatpush1.bf16.msra.mxu0 %v1015
    %1116 = vmatprep.subr.bf16.mxu0 %v1012
    %1117 = vmatpush1.bf16.msra.mxu0 %v1011
    %1118 = vmatprep.subr.bf16.mxu0 %v1008
    %1119 = vmatpush1.bf16.msra.mxu0 %v1007
    %1120 = vmatprep.subr.bf16.mxu0 %v1004
    %1121 = vmatpush1.bf16.msra.mxu0 %v1003
    %1122 = vmatprep.subr.bf16.mxu0 0
    %1123 = vmatpush2.bf16.msra.mxu0 0
    %1124 = vmatprep.subr.bf16.mxu0 0
    %1125 = vmatpush2.bf16.msra.mxu0 0
    %1126 = vmatprep.subr.bf16.mxu0 0
    %1127 = vmatpush2.bf16.msra.mxu0 0
    %1128 = vmatprep.subr.bf16.mxu0 0
    %1129 = vmatpush2.bf16.msra.mxu0 0
    %1130 = vmatprep.subr.bf16.mxu0 0
    %1131 = vmatpush2.bf16.msra.mxu0 0
    %1132 = vmatprep.subr.bf16.mxu0 0
    %1133 = vmatpush2.bf16.msra.mxu0 0
    %1134 = vmatprep.subr.bf16.mxu0 0
    %1135 = vmatpush2.bf16.msra.mxu0 0
    %1136 = vmatprep.subr.bf16.mxu0 0
    %1137 = vmatpush2.bf16.msra.mxu0 0
    %1138 = vmatprep.mubr.bf16.mxu0 0
    %1139 = vmatmul.mubr.bf16.gmra.mxu0 %v872
    %v1140 = vpop.f32.mrf.mxu0
    %v1141 = vadd.f32 0.0, %v1140
    %v1142 = vpop.f32.mrf.mxu0
    %v1143 = vadd.f32 0.0, %v1142
    %v1144 = vpop.f32.mrf.mxu0
    %v1145 = vpop.f32.mrf.mxu0
    %1146 = vdwg.mxu0
    %v1147 = vmul.f32 %v1100, 0.5
    %v1148 = vmul.f32 %v1102, 0.5
    %v1149 = vmul.f32 %v1100, 0.044715
    %v1150 = vmul.f32 %v1102, 0.044715
    %v1151 = vmul.f32 %v1149, %v1100
    %v1152 = vmul.f32 %v1150, %v1102
    %v1153 = vmul.f32 %v1151, %v1100
    %v1154 = vmul.f32 %v1152, %v1102
    %v1155 = vadd.f32 %v1100, %v1153
    %v1156 = vadd.f32 %v1102, %v1154
    %v1157 = vmul.f32 %v1155, 0.7978846
    %v1158 = vmul.f32 %v1156, 0.7978846
    %v1159 = vtanh.pop %v1157
    %v1160 = vtanh.pop %v1158
    %v1161 = vadd.f32 %v1159, 1.0
    %v1162 = vadd.f32 %v1160, 1.0
    %v1163 = vmul.f32 %v1147, %v1161
    %v1164 = vmul.f32 %v1148, %v1162
    %v1165 = vmul.f32 %v1163, %v1141
    %v1166 = vmul.f32 %v1164, %v1143
    %v1167 = vpack.c.bf16 %v1165, %v1165
    %v1168 = vpack.c.bf16 %v1166, %v1166
    %v1169 = vld [vmem:[#allocation10] sm:$0xf]
    %v1170 = vld [vmem:[#allocation10 + $0x4] sm:$0xf]
    %v1171 = vld [vmem:[#allocation10 + $0x8] sm:$0xf]
    %v1172 = vld [vmem:[#allocation10 + $0xc] sm:$0xf]
    %v1173 = vld [vmem:[#allocation10 + $0x10] sm:$0xf]
    %v1174 = vld [vmem:[#allocation10 + $0x14] sm:$0xf]
    %v1175 = vld [vmem:[#allocation10 + $0x18] sm:$0xf]
    %v1176 = vld [vmem:[#allocation10 + $0x1c] sm:$0xf]
    %v1177 = vld [vmem:[#allocation10 + $0x20] sm:$0xf]
    %v1178 = vld [vmem:[#allocation10 + $0x24] sm:$0xf]
    %v1179 = vld [vmem:[#allocation10 + $0x28] sm:$0xf]
    %v1180 = vld [vmem:[#allocation10 + $0x2c] sm:$0xf]
    %v1181 = vld [vmem:[#allocation10 + $0x30] sm:$0xf]
    %v1182 = vld [vmem:[#allocation10 + $0x34] sm:$0xf]
    %v1183 = vld [vmem:[#allocation10 + $0x38] sm:$0xf]
    %v1184 = vld [vmem:[#allocation10 + $0x3c] sm:$0xf]
    %v1185 = vld [vmem:[#allocation10 + $0x40] sm:$0xf]
    %v1186 = vld [vmem:[#allocation10 + $0x44] sm:$0xf]
    %v1187 = vld [vmem:[#allocation10 + $0x48] sm:$0xf]
    %v1188 = vld [vmem:[#allocation10 + $0x4c] sm:$0xf]
    %v1189 = vld [vmem:[#allocation10 + $0x50] sm:$0xf]
    %v1190 = vld [vmem:[#allocation10 + $0x54] sm:$0xf]
    %v1191 = vld [vmem:[#allocation10 + $0x58] sm:$0xf]
    %v1192 = vld [vmem:[#allocation10 + $0x5c] sm:$0xf]
    %v1193 = vld [vmem:[#allocation10 + $0x60] sm:$0xf]
    %v1194 = vld [vmem:[#allocation10 + $0x64] sm:$0xf]
    %v1195 = vld [vmem:[#allocation10 + $0x68] sm:$0xf]
    %v1196 = vld [vmem:[#allocation10 + $0x6c] sm:$0xf]
    %v1197 = vld [vmem:[#allocation10 + $0x70] sm:$0xf]
    %v1198 = vld [vmem:[#allocation10 + $0x74] sm:$0xf]
    %v1199 = vld [vmem:[#allocation10 + $0x78] sm:$0xf]
    %v1200 = vld [vmem:[#allocation10 + $0x7c] sm:$0xf]
    %v1201 = vld [vmem:[%s7 + $0x2] sm:$0x1]
    %v1202 = vld [vmem:[%s7 + $0x3] sm:$0x1]
    %v1235 = vunpack.c.l.b16 %v1169
    %v1236 = vunpack.c.l.b16 %v1170
    %v1237 = vunpack.c.l.b16 %v1171
    %v1238 = vunpack.c.l.b16 %v1172
    %v1239 = vunpack.c.l.b16 %v1173
    %v1240 = vunpack.c.l.b16 %v1174
    %v1241 = vunpack.c.l.b16 %v1175
    %v1242 = vunpack.c.l.b16 %v1176
    %v1243 = vunpack.c.l.b16 %v1177
    %v1244 = vunpack.c.l.b16 %v1178
    %v1245 = vunpack.c.l.b16 %v1179
    %v1246 = vunpack.c.l.b16 %v1180
    %v1247 = vunpack.c.l.b16 %v1181
    %v1248 = vunpack.c.l.b16 %v1182
    %v1249 = vunpack.c.l.b16 %v1183
    %v1250 = vunpack.c.l.b16 %v1184
    %v1251 = vunpack.c.l.b16 %v1185
    %v1252 = vunpack.c.l.b16 %v1186
    %v1253 = vunpack.c.l.b16 %v1187
    %v1254 = vunpack.c.l.b16 %v1188
    %v1255 = vunpack.c.l.b16 %v1189
    %v1256 = vunpack.c.l.b16 %v1190
    %v1257 = vunpack.c.l.b16 %v1191
    %v1258 = vunpack.c.l.b16 %v1192
    %v1259 = vunpack.c.l.b16 %v1193
    %v1260 = vunpack.c.l.b16 %v1194
    %v1261 = vunpack.c.l.b16 %v1195
    %v1262 = vunpack.c.l.b16 %v1196
    %v1263 = vunpack.c.l.b16 %v1197
    %v1264 = vunpack.c.l.b16 %v1198
    %v1265 = vunpack.c.l.b16 %v1199
    %v1266 = vunpack.c.l.b16 %v1200
    %v1267 = vpack.c.b16 %v1236, %v1235
    %v1268 = vpack.c.b16 %v1238, %v1237
    %v1269 = vpack.c.b16 %v1240, %v1239
    %v1270 = vpack.c.b16 %v1242, %v1241
    %v1271 = vpack.c.b16 %v1244, %v1243
    %v1272 = vpack.c.b16 %v1246, %v1245
    %v1273 = vpack.c.b16 %v1248, %v1247
    %v1274 = vpack.c.b16 %v1250, %v1249
    %v1275 = vpack.c.b16 %v1252, %v1251
    %v1276 = vpack.c.b16 %v1254, %v1253
    %v1277 = vpack.c.b16 %v1256, %v1255
    %v1278 = vpack.c.b16 %v1258, %v1257
    %v1279 = vpack.c.b16 %v1260, %v1259
    %v1280 = vpack.c.b16 %v1262, %v1261
    %v1281 = vpack.c.b16 %v1264, %v1263
    %v1282 = vpack.c.b16 %v1266, %v1265
    %1299 = vmatprep.subr.bf16.mxu0 0
    %1300 = vmatpush1.bf16.msra.mxu0 %v1274
    %1301 = vmatprep.subr.bf16.mxu0 0
    %1302 = vmatpush1.bf16.msra.mxu0 %v1273
    %1303 = vmatprep.subr.bf16.mxu0 0
    %1304 = vmatpush1.bf16.msra.mxu0 %v1272
    %1305 = vmatprep.subr.bf16.mxu0 0
    %1306 = vmatpush1.bf16.msra.mxu0 %v1271
    %1307 = vmatprep.subr.bf16.mxu0 0
    %1308 = vmatpush1.bf16.msra.mxu0 %v1270
    %1309 = vmatprep.subr.bf16.mxu0 0
    %1310 = vmatpush1.bf16.msra.mxu0 %v1269
    %1311 = vmatprep.subr.bf16.mxu0 0
    %1312 = vmatpush1.bf16.msra.mxu0 %v1268
    %1313 = vmatprep.subr.bf16.mxu0 0
    %1314 = vmatpush1.bf16.msra.mxu0 %v1267
    %1315 = vmatprep.subr.bf16.mxu0 0
    %1316 = vmatpush2.bf16.msra.mxu0 %v1282
    %1317 = vmatprep.subr.bf16.mxu0 0
    %1318 = vmatpush2.bf16.msra.mxu0 %v1281
    %1319 = vmatprep.subr.bf16.mxu0 0
    %1320 = vmatpush2.bf16.msra.mxu0 %v1280
    %1321 = vmatprep.subr.bf16.mxu0 0
    %1322 = vmatpush2.bf16.msra.mxu0 %v1279
    %1323 = vmatprep.subr.bf16.mxu0 0
    %1324 = vmatpush2.bf16.msra.mxu0 %v1278
    %1325 = vmatprep.subr.bf16.mxu0 0
    %1326 = vmatpush2.bf16.msra.mxu0 %v1277
    %1327 = vmatprep.subr.bf16.mxu0 0
    %1328 = vmatpush2.bf16.msra.mxu0 %v1276
    %1329 = vmatprep.subr.bf16.mxu0 0
    %1330 = vmatpush2.bf16.msra.mxu0 %v1275
    %1331 = vmatprep.mubr.bf16.mxu0 %v1168
    %1332 = vmatmul.mubr.bf16.gmra.mxu0 %v1167
    %v1333 = vpop.f32.mrf.mxu0
    %v1334 = vadd.f32 %v854, %v1333
    %v1335 = vpop.f32.mrf.mxu0
    %v1336 = vpop.f32.mrf.mxu0
    %v1337 = vpop.f32.mrf.mxu0
    %1338 = vdwg.mxu0
    %v1339 = vmul.f32 %v1334, %v1334
    %1340 = vadd.xlane.f32.xlu0 %v1339
    %v1341 = vpop.xlane.xlu0 %1340
    %v1342 = vmul.f32 %v1341, %v290
    %v1343 = vadd.f32 %v1342, 1e-06
    %v1344 = vrsqrt.pop %v1343
    %v1345 = vmul.f32 %v1334, %v1344
    %v1346 = vadd.f32 %v1201, 1.0
    %v1347 = vlaneseq
    %v1348 = vshrl.u32 %v1347, 7
    %v1349 = vsub.s32 0, %v1348
    %v1350 = vrot.slane %v1346, %v1349
    %v1351 = vmul.f32 %v1345, %v1350
    %v1352 = vpack.c.bf16 %v1351, %v1351
    %s1353 = scalar_lea.vmem [#allocation5], 128
    %v1354 = vld [vmem:[%s1353] sm:$0xff]
    %v1355 = vld [vmem:[%s1353 + $0x8] sm:$0xff]
    %v1356 = vld [vmem:[%s1353 + $0x10] sm:$0xff]
    %v1357 = vld [vmem:[%s1353 + $0x18] sm:$0xff]
    %v1358 = vld [vmem:[%s1353 + $0x20] sm:$0xff]
    %v1359 = vld [vmem:[%s1353 + $0x28] sm:$0xff]
    %v1360 = vld [vmem:[%s1353 + $0x30] sm:$0xff]
    %v1361 = vld [vmem:[%s1353 + $0x38] sm:$0xff]
    %v1362 = vld [vmem:[%s1353 + $0x40] sm:$0xff]
    %v1363 = vld [vmem:[%s1353 + $0x48] sm:$0xff]
    %v1364 = vld [vmem:[%s1353 + $0x50] sm:$0xff]
    %v1365 = vld [vmem:[%s1353 + $0x58] sm:$0xff]
    %v1366 = vld [vmem:[%s1353 + $0x60] sm:$0xff]
    %v1367 = vld [vmem:[%s1353 + $0x68] sm:$0xff]
    %v1368 = vld [vmem:[%s1353 + $0x70] sm:$0xff]
    %v1369 = vld [vmem:[%s1353 + $0x78] sm:$0xff]
    %v1386 = vunpack.c.l.b16 %v1354
    %v1387 = vunpack.c.h.b16 %v1354
    %v1388 = vunpack.c.l.b16 %v1355
    %v1389 = vunpack.c.h.b16 %v1355
    %v1390 = vunpack.c.l.b16 %v1356
    %v1391 = vunpack.c.h.b16 %v1356
    %v1392 = vunpack.c.l.b16 %v1357
    %v1393 = vunpack.c.h.b16 %v1357
    %v1394 = vunpack.c.l.b16 %v1358
    %v1395 = vunpack.c.h.b16 %v1358
    %v1396 = vunpack.c.l.b16 %v1359
    %v1397 = vunpack.c.h.b16 %v1359
    %v1398 = vunpack.c.l.b16 %v1360
    %v1399 = vunpack.c.h.b16 %v1360
    %v1400 = vunpack.c.l.b16 %v1361
    %v1401 = vunpack.c.h.b16 %v1361
    %v1402 = vunpack.c.l.b16 %v1362
    %v1403 = vunpack.c.h.b16 %v1362
    %v1404 = vunpack.c.l.b16 %v1363
    %v1405 = vunpack.c.h.b16 %v1363
    %v1406 = vunpack.c.l.b16 %v1364
    %v1407 = vunpack.c.h.b16 %v1364
    %v1408 = vunpack.c.l.b16 %v1365
    %v1409 = vunpack.c.h.b16 %v1365
    %v1410 = vunpack.c.l.b16 %v1366
    %v1411 = vunpack.c.h.b16 %v1366
    %v1412 = vunpack.c.l.b16 %v1367
    %v1413 = vunpack.c.h.b16 %v1367
    %v1414 = vunpack.c.l.b16 %v1368
    %v1415 = vunpack.c.h.b16 %v1368
    %v1416 = vunpack.c.l.b16 %v1369
    %v1417 = vunpack.c.h.b16 %v1369
    %v1418 = vpack.c.b16 %v1388, %v1386
    %v1419 = vpack.c.b16 %v1389, %v1387
    %v1420 = vpack.c.b16 %v1392, %v1390
    %v1421 = vpack.c.b16 %v1393, %v1391
    %v1422 = vpack.c.b16 %v1396, %v1394
    %v1423 = vpack.c.b16 %v1397, %v1395
    %v1424 = vpack.c.b16 %v1400, %v1398
    %v1425 = vpack.c.b16 %v1401, %v1399
    %v1426 = vpack.c.b16 %v1404, %v1402
    %v1427 = vpack.c.b16 %v1405, %v1403
    %v1428 = vpack.c.b16 %v1408, %v1406
    %v1429 = vpack.c.b16 %v1409, %v1407
    %v1430 = vpack.c.b16 %v1412, %v1410
    %v1431 = vpack.c.b16 %v1413, %v1411
    %v1432 = vpack.c.b16 %v1416, %v1414
    %v1433 = vpack.c.b16 %v1417, %v1415
    %1450 = vmatprep.subr.bf16.mxu0 %v1433
    %1451 = vmatpush1.bf16.msra.mxu0 %v1432
    %1452 = vmatprep.subr.bf16.mxu0 %v1431
    %1453 = vmatpush1.bf16.msra.mxu0 %v1430
    %1454 = vmatprep.subr.bf16.mxu0 %v1429
    %1455 = vmatpush1.bf16.msra.mxu0 %v1428
    %1456 = vmatprep.subr.bf16.mxu0 %v1427
    %1457 = vmatpush1.bf16.msra.mxu0 %v1426
    %1458 = vmatprep.subr.bf16.mxu0 %v1425
    %1459 = vmatpush1.bf16.msra.mxu0 %v1424
    %1460 = vmatprep.subr.bf16.mxu0 %v1423
    %1461 = vmatpush1.bf16.msra.mxu0 %v1422
    %1462 = vmatprep.subr.bf16.mxu0 %v1421
    %1463 = vmatpush1.bf16.msra.mxu0 %v1420
    %1464 = vmatprep.subr.bf16.mxu0 %v1419
    %1465 = vmatpush1.bf16.msra.mxu0 %v1418
    %1466 = vmatprep.subr.bf16.mxu0 0
    %1467 = vmatpush2.bf16.msra.mxu0 0
    %1468 = vmatprep.subr.bf16.mxu0 0
    %1469 = vmatpush2.bf16.msra.mxu0 0
    %1470 = vmatprep.subr.bf16.mxu0 0
    %1471 = vmatpush2.bf16.msra.mxu0 0
    %1472 = vmatprep.subr.bf16.mxu0 0
    %1473 = vmatpush2.bf16.msra.mxu0 0
    %1474 = vmatprep.subr.bf16.mxu0 0
    %1475 = vmatpush2.bf16.msra.mxu0 0
    %1476 = vmatprep.subr.bf16.mxu0 0
    %1477 = vmatpush2.bf16.msra.mxu0 0
    %1478 = vmatprep.subr.bf16.mxu0 0
    %1479 = vmatpush2.bf16.msra.mxu0 0
    %1480 = vmatprep.subr.bf16.mxu0 0
    %1481 = vmatpush2.bf16.msra.mxu0 0
    %1482 = vmatprep.mubr.bf16.mxu0 0
    %1483 = vmatmul.mubr.bf16.gmra.mxu0 %v1352
    %v1484 = vpop.f32.mrf.mxu0
    %v1485 = vadd.f32 0.0, %v1484
    %v1486 = vpop.f32.mrf.mxu0
    %v1487 = vadd.f32 0.0, %v1486
    %v1488 = vpop.f32.mrf.mxu0
    %v1489 = vpop.f32.mrf.mxu0
    %1490 = vdwg.mxu0
    %1492 = vrot.lane.b32.xlu0 %v1487, 96
    %v1493 = vpop.permute.xlu0 %1492
    %1495 = vrot.lane.b32.xlu0 %v1487, 32
    %v1496 = vpop.permute.xlu0 %1495
    %v1498 = vsel %vm446, %v1493, %v1496
    %v1499 = vmul.f32 %v1487, %v281
    %v1500 = vmul.f32 %v1498, %v451
    %v1501 = vadd.f32 %v1499, %v1500
    %v1502 = vpack.c.bf16 %v1487, %v1487
    %1504 = vrot.lane.b32.xlu0 %v1485, 96
    %v1505 = vpop.permute.xlu0 %1504
    %1507 = vrot.lane.b32.xlu0 %v1485, 32
    %v1508 = vpop.permute.xlu0 %1507
    %v1510 = vsel %vm446, %v1505, %v1508
    %v1511 = vmul.f32 %v1485, %v281
    %v1512 = vmul.f32 %v1510, %v451
    %v1513 = vadd.f32 %v1511, %v1512
    %v1515 = vsel %vm467, %v1513, 0
    %v1518 = vsel %vm467, %v1501, 0
    %1520 = vmatprep.subr.mxu0 0.0
    %1521 = vmatpush1.xpose.msra.mxu0 0.0
    %1522 = vmatprep.subr.mxu0 0.0
    %1523 = vmatpush1.xpose.msra.mxu0 0.0
    %1524 = vmatprep.subr.mxu0 0.0
    %1525 = vmatpush1.xpose.msra.mxu0 0.0
    %1526 = vmatprep.subr.mxu0 0.0
    %1527 = vmatpush1.xpose.msra.mxu0 0.0
    %1528 = vmatprep.subr.mxu0 0.0
    %1529 = vmatpush1.xpose.msra.mxu0 0.0
    %1530 = vmatprep.subr.mxu0 0.0
    %1531 = vmatpush1.xpose.msra.mxu0 0.0
    %1532 = vmatprep.subr.mxu0 0.0
    %1533 = vmatpush1.xpose.msra.mxu0 0.0
    %1534 = vmatprep.subr.mxu0 0.0
    %1535 = vmatpush1.xpose.msra.mxu0 0.0
    %1536 = vmatprep.subr.mxu0 0.0
    %1537 = vmatpush1.xpose.msra.mxu0 0.0
    %1538 = vmatprep.subr.mxu0 0.0
    %1539 = vmatpush1.xpose.msra.mxu0 0.0
    %1540 = vmatprep.subr.mxu0 0.0
    %1541 = vmatpush1.xpose.msra.mxu0 0.0
    %1542 = vmatprep.subr.mxu0 0.0
    %1543 = vmatpush1.xpose.msra.mxu0 0.0
    %1544 = vmatprep.subr.mxu0 0.0
    %1545 = vmatpush1.xpose.msra.mxu0 0.0
    %1546 = vmatprep.subr.mxu0 0.0
    %1547 = vmatpush1.xpose.msra.mxu0 0.0
    %1548 = vmatprep.subr.mxu0 0.0
    %1549 = vmatpush1.xpose.msra.mxu0 0.0
    %1550 = vmatprep.subr.mxu0 0.0
    %1551 = vmatpush1.xpose.msra.mxu0 %v1518
    %1552 = vmatprep.subr.mxu0 0.0
    %1553 = vmatpush2.xpose.msra.mxu0 0.0
    %1554 = vmatprep.subr.mxu0 0.0
    %1555 = vmatpush2.xpose.msra.mxu0 0.0
    %1556 = vmatprep.subr.mxu0 0.0
    %1557 = vmatpush2.xpose.msra.mxu0 0.0
    %1558 = vmatprep.subr.mxu0 0.0
    %1559 = vmatpush2.xpose.msra.mxu0 0.0
    %1560 = vmatprep.subr.mxu0 0.0
    %1561 = vmatpush2.xpose.msra.mxu0 0.0
    %1562 = vmatprep.subr.mxu0 0.0
    %1563 = vmatpush2.xpose.msra.mxu0 0.0
    %1564 = vmatprep.subr.mxu0 0.0
    %1565 = vmatpush2.xpose.msra.mxu0 0.0
    %1566 = vmatprep.subr.mxu0 0.0
    %1567 = vmatpush2.xpose.msra.mxu0 0.0
    %1568 = vmatprep.subr.mxu0 0.0
    %1569 = vmatpush2.xpose.msra.mxu0 0.0
    %1570 = vmatprep.subr.mxu0 0.0
    %1571 = vmatpush2.xpose.msra.mxu0 0.0
    %1572 = vmatprep.subr.mxu0 0.0
    %1573 = vmatpush2.xpose.msra.mxu0 0.0
    %1574 = vmatprep.subr.mxu0 0.0
    %1575 = vmatpush2.xpose.msra.mxu0 0.0
    %1576 = vmatprep.subr.mxu0 0.0
    %1577 = vmatpush2.xpose.msra.mxu0 0.0
    %1578 = vmatprep.subr.mxu0 0.0
    %1579 = vmatpush2.xpose.msra.mxu0 0.0
    %1580 = vmatprep.subr.mxu0 0.0
    %1581 = vmatpush2.xpose.msra.mxu0 0.0
    %1582 = vmatprep.subr.mxu0 0.0
    %1583 = vmatpush2.xpose.msra.mxu0 0.0
    %1584 = vmatprep.mubr.f32.mxu0 0.0
    %1585 = vmatmul.mubr.f32.gmra.mxu0 %v1515
    %v1586 = vpop.f32.mrf.mxu0
    %v1587 = vadd.f32 0.0, %v1586
    %v1588 = vpop.f32.mrf.mxu0
    %1589 = vdwg.mxu0
    %v1590 = vmul.f32 %v1587, 0.125
    %v1591 = vsel %vm284, %v1590, -1e+30
    %v1592 = vsel %vm546, %v1591, -inf
    %1593 = vmax.xlane.f32.xlu0 %v1592
    %v1594 = vpop.xlane.xlu0 %1593
    %v1595 = vsub.f32 %v1591, %v1594
    %v1596 = vmul.f32 %v1595, 1.442695
    %v1597 = vpow.pop %v1596
    %v1598 = vsel %vm546, %v1597, 0.0
    %1599 = vadd.xlane.f32.xlu0 %v1598
    %v1600 = vpop.xlane.xlu0 %1599
    %v1601 = vrcp.pop %v1600
    %v1602 = vmul.f32 %v1597, %v1601
    %v1603 = vpack.c.bf16 %v1602, %v1602
    %1605 = vrot.lane.b32.xlu0 %v1502, 64
    %v1606 = vpop.permute.xlu0 %1605
    %v1608 = vsel %vm546, %v1603, 0
    %v1611 = vsel %vm565, %v1606, 0
    %1613 = vmatprep.subr.bf16.mxu0 0
    %1614 = vmatpush1.bf16.msra.mxu0 0
    %1615 = vmatprep.subr.bf16.mxu0 0
    %1616 = vmatpush1.bf16.msra.mxu0 0
    %1617 = vmatprep.subr.bf16.mxu0 0
    %1618 = vmatpush1.bf16.msra.mxu0 0
    %1619 = vmatprep.subr.bf16.mxu0 0
    %1620 = vmatpush1.bf16.msra.mxu0 0
    %1621 = vmatprep.subr.bf16.mxu0 0
    %1622 = vmatpush1.bf16.msra.mxu0 0
    %1623 = vmatprep.subr.bf16.mxu0 0
    %1624 = vmatpush1.bf16.msra.mxu0 0
    %1625 = vmatprep.subr.bf16.mxu0 0
    %1626 = vmatpush1.bf16.msra.mxu0 0
    %1627 = vmatprep.subr.bf16.mxu0 0
    %1628 = vmatpush1.bf16.msra.mxu0 %v1611
    %1629 = vmatprep.subr.bf16.mxu0 0
    %1630 = vmatpush2.bf16.msra.mxu0 0
    %1631 = vmatprep.subr.bf16.mxu0 0
    %1632 = vmatpush2.bf16.msra.mxu0 0
    %1633 = vmatprep.subr.bf16.mxu0 0
    %1634 = vmatpush2.bf16.msra.mxu0 0
    %1635 = vmatprep.subr.bf16.mxu0 0
    %1636 = vmatpush2.bf16.msra.mxu0 0
    %1637 = vmatprep.subr.bf16.mxu0 0
    %1638 = vmatpush2.bf16.msra.mxu0 0
    %1639 = vmatprep.subr.bf16.mxu0 0
    %1640 = vmatpush2.bf16.msra.mxu0 0
    %1641 = vmatprep.subr.bf16.mxu0 0
    %1642 = vmatpush2.bf16.msra.mxu0 0
    %1643 = vmatprep.subr.bf16.mxu0 0
    %1644 = vmatpush2.bf16.msra.mxu0 0
    %1645 = vmatprep.mubr.bf16.mxu0 0
    %1646 = vmatmul.mubr.bf16.gmra.mxu0 %v1608
    %v1647 = vpop.f32.mrf.mxu0
    %v1648 = vadd.f32 0.0, %v1647
    %v1649 = vpop.f32.mrf.mxu0
    %v1650 = vpop.f32.mrf.mxu0
    %v1651 = vpop.f32.mrf.mxu0
    %1652 = vdwg.mxu0
    %v1653 = vsel %vm446, %v1508, %v1505
    %v1654 = vmul.f32 %v1485, %v451
    %v1655 = vmul.f32 %v1653, %v451
    %1657 = vrot.lane.b32.xlu0 %v1655, 64
    %v1658 = vpop.permute.xlu0 %1657
    %v1660 = vadd.f32 %v1654, %v1658
    %1662 = vrot.lane.b32.xlu0 %v1660, 64
    %v1663 = vpop.permute.xlu0 %1662
    %v1664 = vsel %vm467, %v1663, 0
    %1666 = vmatprep.subr.mxu0 0.0
    %1667 = vmatpush1.xpose.msra.mxu0 0.0
    %1668 = vmatprep.subr.mxu0 0.0
    %1669 = vmatpush1.xpose.msra.mxu0 0.0
    %1670 = vmatprep.subr.mxu0 0.0
    %1671 = vmatpush1.xpose.msra.mxu0 0.0
    %1672 = vmatprep.subr.mxu0 0.0
    %1673 = vmatpush1.xpose.msra.mxu0 0.0
    %1674 = vmatprep.subr.mxu0 0.0
    %1675 = vmatpush1.xpose.msra.mxu0 0.0
    %1676 = vmatprep.subr.mxu0 0.0
    %1677 = vmatpush1.xpose.msra.mxu0 0.0
    %1678 = vmatprep.subr.mxu0 0.0
    %1679 = vmatpush1.xpose.msra.mxu0 0.0
    %1680 = vmatprep.subr.mxu0 0.0
    %1681 = vmatpush1.xpose.msra.mxu0 0.0
    %1682 = vmatprep.subr.mxu0 0.0
    %1683 = vmatpush1.xpose.msra.mxu0 0.0
    %1684 = vmatprep.subr.mxu0 0.0
    %1685 = vmatpush1.xpose.msra.mxu0 0.0
    %1686 = vmatprep.subr.mxu0 0.0
    %1687 = vmatpush1.xpose.msra.mxu0 0.0
    %1688 = vmatprep.subr.mxu0 0.0
    %1689 = vmatpush1.xpose.msra.mxu0 0.0
    %1690 = vmatprep.subr.mxu0 0.0
    %1691 = vmatpush1.xpose.msra.mxu0 0.0
    %1692 = vmatprep.subr.mxu0 0.0
    %1693 = vmatpush1.xpose.msra.mxu0 0.0
    %1694 = vmatprep.subr.mxu0 0.0
    %1695 = vmatpush1.xpose.msra.mxu0 0.0
    %1696 = vmatprep.subr.mxu0 0.0
    %1697 = vmatpush1.xpose.msra.mxu0 %v1518
    %1698 = vmatprep.subr.mxu0 0.0
    %1699 = vmatpush2.xpose.msra.mxu0 0.0
    %1700 = vmatprep.subr.mxu0 0.0
    %1701 = vmatpush2.xpose.msra.mxu0 0.0
    %1702 = vmatprep.subr.mxu0 0.0
    %1703 = vmatpush2.xpose.msra.mxu0 0.0
    %1704 = vmatprep.subr.mxu0 0.0
    %1705 = vmatpush2.xpose.msra.mxu0 0.0
    %1706 = vmatprep.subr.mxu0 0.0
    %1707 = vmatpush2.xpose.msra.mxu0 0.0
    %1708 = vmatprep.subr.mxu0 0.0
    %1709 = vmatpush2.xpose.msra.mxu0 0.0
    %1710 = vmatprep.subr.mxu0 0.0
    %1711 = vmatpush2.xpose.msra.mxu0 0.0
    %1712 = vmatprep.subr.mxu0 0.0
    %1713 = vmatpush2.xpose.msra.mxu0 0.0
    %1714 = vmatprep.subr.mxu0 0.0
    %1715 = vmatpush2.xpose.msra.mxu0 0.0
    %1716 = vmatprep.subr.mxu0 0.0
    %1717 = vmatpush2.xpose.msra.mxu0 0.0
    %1718 = vmatprep.subr.mxu0 0.0
    %1719 = vmatpush2.xpose.msra.mxu0 0.0
    %1720 = vmatprep.subr.mxu0 0.0
    %1721 = vmatpush2.xpose.msra.mxu0 0.0
    %1722 = vmatprep.subr.mxu0 0.0
    %1723 = vmatpush2.xpose.msra.mxu0 0.0
    %1724 = vmatprep.subr.mxu0 0.0
    %1725 = vmatpush2.xpose.msra.mxu0 0.0
    %1726 = vmatprep.subr.mxu0 0.0
    %1727 = vmatpush2.xpose.msra.mxu0 0.0
    %1728 = vmatprep.subr.mxu0 0.0
    %1729 = vmatpush2.xpose.msra.mxu0 0.0
    %1730 = vmatprep.mubr.f32.mxu0 0.0
    %1731 = vmatmul.mubr.f32.gmra.mxu0 %v1664
    %v1732 = vpop.f32.mrf.mxu0
    %v1733 = vadd.f32 0.0, %v1732
    %v1734 = vpop.f32.mrf.mxu0
    %1735 = vdwg.mxu0
    %v1736 = vmul.f32 %v1733, 0.125
    %v1737 = vsel %vm284, %v1736, -1e+30
    %v1738 = vsel %vm546, %v1737, -inf
    %1739 = vmax.xlane.f32.xlu0 %v1738
    %v1740 = vpop.xlane.xlu0 %1739
    %v1741 = vsub.f32 %v1737, %v1740
    %v1742 = vmul.f32 %v1741, 1.442695
    %v1743 = vpow.pop %v1742
    %v1744 = vsel %vm546, %v1743, 0.0
    %1745 = vadd.xlane.f32.xlu0 %v1744
    %v1746 = vpop.xlane.xlu0 %1745
    %v1747 = vrcp.pop %v1746
    %v1748 = vmul.f32 %v1743, %v1747
    %v1749 = vpack.c.bf16 %v1748, %v1748
    %v1751 = vsel %vm546, %v1749, 0
    %1753 = vmatprep.subr.bf16.mxu0 0
    %1754 = vmatpush1.bf16.msra.mxu0 0
    %1755 = vmatprep.subr.bf16.mxu0 0
    %1756 = vmatpush1.bf16.msra.mxu0 0
    %1757 = vmatprep.subr.bf16.mxu0 0
    %1758 = vmatpush1.bf16.msra.mxu0 0
    %1759 = vmatprep.subr.bf16.mxu0 0
    %1760 = vmatpush1.bf16.msra.mxu0 0
    %1761 = vmatprep.subr.bf16.mxu0 0
    %1762 = vmatpush1.bf16.msra.mxu0 0
    %1763 = vmatprep.subr.bf16.mxu0 0
    %1764 = vmatpush1.bf16.msra.mxu0 0
    %1765 = vmatprep.subr.bf16.mxu0 0
    %1766 = vmatpush1.bf16.msra.mxu0 0
    %1767 = vmatprep.subr.bf16.mxu0 0
    %1768 = vmatpush1.bf16.msra.mxu0 %v1611
    %1769 = vmatprep.subr.bf16.mxu0 0
    %1770 = vmatpush2.bf16.msra.mxu0 0
    %1771 = vmatprep.subr.bf16.mxu0 0
    %1772 = vmatpush2.bf16.msra.mxu0 0
    %1773 = vmatprep.subr.bf16.mxu0 0
    %1774 = vmatpush2.bf16.msra.mxu0 0
    %1775 = vmatprep.subr.bf16.mxu0 0
    %1776 = vmatpush2.bf16.msra.mxu0 0
    %1777 = vmatprep.subr.bf16.mxu0 0
    %1778 = vmatpush2.bf16.msra.mxu0 0
    %1779 = vmatprep.subr.bf16.mxu0 0
    %1780 = vmatpush2.bf16.msra.mxu0 0
    %1781 = vmatprep.subr.bf16.mxu0 0
    %1782 = vmatpush2.bf16.msra.mxu0 0
    %1783 = vmatprep.subr.bf16.mxu0 0
    %1784 = vmatpush2.bf16.msra.mxu0 0
    %1785 = vmatprep.mubr.bf16.mxu0 0
    %1786 = vmatmul.mubr.bf16.gmra.mxu0 %v1751
    %v1787 = vpop.f32.mrf.mxu0
    %v1788 = vadd.f32 0.0, %v1787
    %v1789 = vpop.f32.mrf.mxu0
    %v1790 = vpop.f32.mrf.mxu0
    %v1791 = vpop.f32.mrf.mxu0
    %1792 = vdwg.mxu0
    %1794 = vrot.lane.b32.xlu0 %v1788, 64
    %v1795 = vpop.permute.xlu0 %1794
    %v1797 = vsel %vm467, %v1648, %v1795
    %v1798 = vpack.c.bf16 %v1797, %v1797
    %s1799 = scalar_lea.vmem [#allocation7], 64
    %v1800 = vld [vmem:[%s1799] sm:$0xf]
    %v1801 = vld [vmem:[%s1799 + $0x4] sm:$0xf]
    %v1802 = vld [vmem:[%s1799 + $0x8] sm:$0xf]
    %v1803 = vld [vmem:[%s1799 + $0xc] sm:$0xf]
    %v1804 = vld [vmem:[%s1799 + $0x10] sm:$0xf]
    %v1805 = vld [vmem:[%s1799 + $0x14] sm:$0xf]
    %v1806 = vld [vmem:[%s1799 + $0x18] sm:$0xf]
    %v1807 = vld [vmem:[%s1799 + $0x1c] sm:$0xf]
    %v1808 = vld [vmem:[%s1799 + $0x20] sm:$0xf]
    %v1809 = vld [vmem:[%s1799 + $0x24] sm:$0xf]
    %v1810 = vld [vmem:[%s1799 + $0x28] sm:$0xf]
    %v1811 = vld [vmem:[%s1799 + $0x2c] sm:$0xf]
    %v1812 = vld [vmem:[%s1799 + $0x30] sm:$0xf]
    %v1813 = vld [vmem:[%s1799 + $0x34] sm:$0xf]
    %v1814 = vld [vmem:[%s1799 + $0x38] sm:$0xf]
    %v1815 = vld [vmem:[%s1799 + $0x3c] sm:$0xf]
    %v1832 = vunpack.c.l.b16 %v1800
    %v1833 = vunpack.c.l.b16 %v1801
    %v1834 = vunpack.c.l.b16 %v1802
    %v1835 = vunpack.c.l.b16 %v1803
    %v1836 = vunpack.c.l.b16 %v1804
    %v1837 = vunpack.c.l.b16 %v1805
    %v1838 = vunpack.c.l.b16 %v1806
    %v1839 = vunpack.c.l.b16 %v1807
    %v1840 = vunpack.c.l.b16 %v1808
    %v1841 = vunpack.c.l.b16 %v1809
    %v1842 = vunpack.c.l.b16 %v1810
    %v1843 = vunpack.c.l.b16 %v1811
    %v1844 = vunpack.c.l.b16 %v1812
    %v1845 = vunpack.c.l.b16 %v1813
    %v1846 = vunpack.c.l.b16 %v1814
    %v1847 = vunpack.c.l.b16 %v1815
    %v1848 = vpack.c.b16 %v1833, %v1832
    %v1849 = vpack.c.b16 %v1835, %v1834
    %v1850 = vpack.c.b16 %v1837, %v1836
    %v1851 = vpack.c.b16 %v1839, %v1838
    %v1852 = vpack.c.b16 %v1841, %v1840
    %v1853 = vpack.c.b16 %v1843, %v1842
    %v1854 = vpack.c.b16 %v1845, %v1844
    %v1855 = vpack.c.b16 %v1847, %v1846
    %1864 = vmatprep.subr.bf16.mxu0 0
    %1865 = vmatpush1.bf16.msra.mxu0 %v1855
    %1866 = vmatprep.subr.bf16.mxu0 0
    %1867 = vmatpush1.bf16.msra.mxu0 %v1854
    %1868 = vmatprep.subr.bf16.mxu0 0
    %1869 = vmatpush1.bf16.msra.mxu0 %v1853
    %1870 = vmatprep.subr.bf16.mxu0 0
    %1871 = vmatpush1.bf16.msra.mxu0 %v1852
    %1872 = vmatprep.subr.bf16.mxu0 0
    %1873 = vmatpush1.bf16.msra.mxu0 %v1851
    %1874 = vmatprep.subr.bf16.mxu0 0
    %1875 = vmatpush1.bf16.msra.mxu0 %v1850
    %1876 = vmatprep.subr.bf16.mxu0 0
    %1877 = vmatpush1.bf16.msra.mxu0 %v1849
    %1878 = vmatprep.subr.bf16.mxu0 0
    %1879 = vmatpush1.bf16.msra.mxu0 %v1848
    %1880 = vmatprep.subr.bf16.mxu0 0
    %1881 = vmatpush2.bf16.msra.mxu0 0
    %1882 = vmatprep.subr.bf16.mxu0 0
    %1883 = vmatpush2.bf16.msra.mxu0 0
    %1884 = vmatprep.subr.bf16.mxu0 0
    %1885 = vmatpush2.bf16.msra.mxu0 0
    %1886 = vmatprep.subr.bf16.mxu0 0
    %1887 = vmatpush2.bf16.msra.mxu0 0
    %1888 = vmatprep.subr.bf16.mxu0 0
    %1889 = vmatpush2.bf16.msra.mxu0 0
    %1890 = vmatprep.subr.bf16.mxu0 0
    %1891 = vmatpush2.bf16.msra.mxu0 0
    %1892 = vmatprep.subr.bf16.mxu0 0
    %1893 = vmatpush2.bf16.msra.mxu0 0
    %1894 = vmatprep.subr.bf16.mxu0 0
    %1895 = vmatpush2.bf16.msra.mxu0 0
    %1896 = vmatprep.mubr.bf16.mxu0 0
    %1897 = vmatmul.mubr.bf16.gmra.mxu0 %v1798
    %v1898 = vpop.f32.mrf.mxu0
    %v1899 = vadd.f32 %v1334, %v1898
    %v1900 = vpop.f32.mrf.mxu0
    %v1901 = vpop.f32.mrf.mxu0
    %v1902 = vpop.f32.mrf.mxu0
    %1903 = vdwg.mxu0
    %v1904 = vmul.f32 %v1899, %v1899
    %1905 = vadd.xlane.f32.xlu0 %v1904
    %v1906 = vpop.xlane.xlu0 %1905
    %v1907 = vmul.f32 %v1906, %v290
    %v1908 = vadd.f32 %v1907, 1e-06
    %v1909 = vrsqrt.pop %v1908
    %v1910 = vmul.f32 %v1899, %v1909
    %v1911 = vadd.f32 %v1202, 1.0
    %v1912 = vlaneseq
    %v1913 = vshrl.u32 %v1912, 7
    %v1914 = vsub.s32 0, %v1913
    %v1915 = vrot.slane %v1911, %v1914
    %v1916 = vmul.f32 %v1910, %v1915
    %v1917 = vpack.c.bf16 %v1916, %v1916
    %s1918 = scalar_lea.vmem [#allocation8], 256
    %v1919 = vld [vmem:[%s1918] sm:$0xff]
    %v1920 = vld [vmem:[%s1918 + $0x8] sm:$0xff]
    %v1921 = vld [vmem:[%s1918 + $0x10] sm:$0xff]
    %v1922 = vld [vmem:[%s1918 + $0x18] sm:$0xff]
    %v1923 = vld [vmem:[%s1918 + $0x20] sm:$0xff]
    %v1924 = vld [vmem:[%s1918 + $0x28] sm:$0xff]
    %v1925 = vld [vmem:[%s1918 + $0x30] sm:$0xff]
    %v1926 = vld [vmem:[%s1918 + $0x38] sm:$0xff]
    %v1927 = vld [vmem:[%s1918 + $0x40] sm:$0xff]
    %v1928 = vld [vmem:[%s1918 + $0x48] sm:$0xff]
    %v1929 = vld [vmem:[%s1918 + $0x50] sm:$0xff]
    %v1930 = vld [vmem:[%s1918 + $0x58] sm:$0xff]
    %v1931 = vld [vmem:[%s1918 + $0x60] sm:$0xff]
    %v1932 = vld [vmem:[%s1918 + $0x68] sm:$0xff]
    %v1933 = vld [vmem:[%s1918 + $0x70] sm:$0xff]
    %v1934 = vld [vmem:[%s1918 + $0x78] sm:$0xff]
    %v1935 = vld [vmem:[%s1918 + $0x80] sm:$0xff]
    %v1936 = vld [vmem:[%s1918 + $0x88] sm:$0xff]
    %v1937 = vld [vmem:[%s1918 + $0x90] sm:$0xff]
    %v1938 = vld [vmem:[%s1918 + $0x98] sm:$0xff]
    %v1939 = vld [vmem:[%s1918 + $0xa0] sm:$0xff]
    %v1940 = vld [vmem:[%s1918 + $0xa8] sm:$0xff]
    %v1941 = vld [vmem:[%s1918 + $0xb0] sm:$0xff]
    %v1942 = vld [vmem:[%s1918 + $0xb8] sm:$0xff]
    %v1943 = vld [vmem:[%s1918 + $0xc0] sm:$0xff]
    %v1944 = vld [vmem:[%s1918 + $0xc8] sm:$0xff]
    %v1945 = vld [vmem:[%s1918 + $0xd0] sm:$0xff]
    %v1946 = vld [vmem:[%s1918 + $0xd8] sm:$0xff]
    %v1947 = vld [vmem:[%s1918 + $0xe0] sm:$0xff]
    %v1948 = vld [vmem:[%s1918 + $0xe8] sm:$0xff]
    %v1949 = vld [vmem:[%s1918 + $0xf0] sm:$0xff]
    %v1950 = vld [vmem:[%s1918 + $0xf8] sm:$0xff]
    %v1983 = vunpack.c.l.b16 %v1919
    %v1984 = vunpack.c.h.b16 %v1919
    %v1985 = vunpack.c.l.b16 %v1920
    %v1986 = vunpack.c.h.b16 %v1920
    %v1987 = vunpack.c.l.b16 %v1921
    %v1988 = vunpack.c.h.b16 %v1921
    %v1989 = vunpack.c.l.b16 %v1922
    %v1990 = vunpack.c.h.b16 %v1922
    %v1991 = vunpack.c.l.b16 %v1923
    %v1992 = vunpack.c.h.b16 %v1923
    %v1993 = vunpack.c.l.b16 %v1924
    %v1994 = vunpack.c.h.b16 %v1924
    %v1995 = vunpack.c.l.b16 %v1925
    %v1996 = vunpack.c.h.b16 %v1925
    %v1997 = vunpack.c.l.b16 %v1926
    %v1998 = vunpack.c.h.b16 %v1926
    %v1999 = vunpack.c.l.b16 %v1927
    %v2000 = vunpack.c.h.b16 %v1927
    %v2001 = vunpack.c.l.b16 %v1928
    %v2002 = vunpack.c.h.b16 %v1928
    %v2003 = vunpack.c.l.b16 %v1929
    %v2004 = vunpack.c.h.b16 %v1929
    %v2005 = vunpack.c.l.b16 %v1930
    %v2006 = vunpack.c.h.b16 %v1930
    %v2007 = vunpack.c.l.b16 %v1931
    %v2008 = vunpack.c.h.b16 %v1931
    %v2009 = vunpack.c.l.b16 %v1932
    %v2010 = vunpack.c.h.b16 %v1932
    %v2011 = vunpack.c.l.b16 %v1933
    %v2012 = vunpack.c.h.b16 %v1933
    %v2013 = vunpack.c.l.b16 %v1934
    %v2014 = vunpack.c.h.b16 %v1934
    %v2015 = vunpack.c.l.b16 %v1935
    %v2016 = vunpack.c.h.b16 %v1935
    %v2017 = vunpack.c.l.b16 %v1936
    %v2018 = vunpack.c.h.b16 %v1936
    %v2019 = vunpack.c.l.b16 %v1937
    %v2020 = vunpack.c.h.b16 %v1937
    %v2021 = vunpack.c.l.b16 %v1938
    %v2022 = vunpack.c.h.b16 %v1938
    %v2023 = vunpack.c.l.b16 %v1939
    %v2024 = vunpack.c.h.b16 %v1939
    %v2025 = vunpack.c.l.b16 %v1940
    %v2026 = vunpack.c.h.b16 %v1940
    %v2027 = vunpack.c.l.b16 %v1941
    %v2028 = vunpack.c.h.b16 %v1941
    %v2029 = vunpack.c.l.b16 %v1942
    %v2030 = vunpack.c.h.b16 %v1942
    %v2031 = vunpack.c.l.b16 %v1943
    %v2032 = vunpack.c.h.b16 %v1943
    %v2033 = vunpack.c.l.b16 %v1944
    %v2034 = vunpack.c.h.b16 %v1944
    %v2035 = vunpack.c.l.b16 %v1945
    %v2036 = vunpack.c.h.b16 %v1945
    %v2037 = vunpack.c.l.b16 %v1946
    %v2038 = vunpack.c.h.b16 %v1946
    %v2039 = vunpack.c.l.b16 %v1947
    %v2040 = vunpack.c.h.b16 %v1947
    %v2041 = vunpack.c.l.b16 %v1948
    %v2042 = vunpack.c.h.b16 %v1948
    %v2043 = vunpack.c.l.b16 %v1949
    %v2044 = vunpack.c.h.b16 %v1949
    %v2045 = vunpack.c.l.b16 %v1950
    %v2046 = vunpack.c.h.b16 %v1950
    %v2047 = vpack.c.b16 %v1987, %v1983
    %v2048 = vpack.c.b16 %v1988, %v1984
    %v2049 = vpack.c.b16 %v1989, %v1985
    %v2050 = vpack.c.b16 %v1990, %v1986
    %v2051 = vpack.c.b16 %v1995, %v1991
    %v2052 = vpack.c.b16 %v1996, %v1992
    %v2053 = vpack.c.b16 %v1997, %v1993
    %v2054 = vpack.c.b16 %v1998, %v1994
    %v2055 = vpack.c.b16 %v2003, %v1999
    %v2056 = vpack.c.b16 %v2004, %v2000
    %v2057 = vpack.c.b16 %v2005, %v2001
    %v2058 = vpack.c.b16 %v2006, %v2002
    %v2059 = vpack.c.b16 %v2011, %v2007
    %v2060 = vpack.c.b16 %v2012, %v2008
    %v2061 = vpack.c.b16 %v2013, %v2009
    %v2062 = vpack.c.b16 %v2014, %v2010
    %v2063 = vpack.c.b16 %v2019, %v2015
    %v2064 = vpack.c.b16 %v2020, %v2016
    %v2065 = vpack.c.b16 %v2021, %v2017
    %v2066 = vpack.c.b16 %v2022, %v2018
    %v2067 = vpack.c.b16 %v2027, %v2023
    %v2068 = vpack.c.b16 %v2028, %v2024
    %v2069 = vpack.c.b16 %v2029, %v2025
    %v2070 = vpack.c.b16 %v2030, %v2026
    %v2071 = vpack.c.b16 %v2035, %v2031
    %v2072 = vpack.c.b16 %v2036, %v2032
    %v2073 = vpack.c.b16 %v2037, %v2033
    %v2074 = vpack.c.b16 %v2038, %v2034
    %v2075 = vpack.c.b16 %v2043, %v2039
    %v2076 = vpack.c.b16 %v2044, %v2040
    %v2077 = vpack.c.b16 %v2045, %v2041
    %v2078 = vpack.c.b16 %v2046, %v2042
    %2111 = vmatprep.subr.bf16.mxu0 %v2076
    %2112 = vmatpush1.bf16.msra.mxu0 %v2075
    %2113 = vmatprep.subr.bf16.mxu0 %v2072
    %2114 = vmatpush1.bf16.msra.mxu0 %v2071
    %2115 = vmatprep.subr.bf16.mxu0 %v2068
    %2116 = vmatpush1.bf16.msra.mxu0 %v2067
    %2117 = vmatprep.subr.bf16.mxu0 %v2064
    %2118 = vmatpush1.bf16.msra.mxu0 %v2063
    %2119 = vmatprep.subr.bf16.mxu0 %v2060
    %2120 = vmatpush1.bf16.msra.mxu0 %v2059
    %2121 = vmatprep.subr.bf16.mxu0 %v2056
    %2122 = vmatpush1.bf16.msra.mxu0 %v2055
    %2123 = vmatprep.subr.bf16.mxu0 %v2052
    %2124 = vmatpush1.bf16.msra.mxu0 %v2051
    %2125 = vmatprep.subr.bf16.mxu0 %v2048
    %2126 = vmatpush1.bf16.msra.mxu0 %v2047
    %2127 = vmatprep.subr.bf16.mxu0 0
    %2128 = vmatpush2.bf16.msra.mxu0 0
    %2129 = vmatprep.subr.bf16.mxu0 0
    %2130 = vmatpush2.bf16.msra.mxu0 0
    %2131 = vmatprep.subr.bf16.mxu0 0
    %2132 = vmatpush2.bf16.msra.mxu0 0
    %2133 = vmatprep.subr.bf16.mxu0 0
    %2134 = vmatpush2.bf16.msra.mxu0 0
    %2135 = vmatprep.subr.bf16.mxu0 0
    %2136 = vmatpush2.bf16.msra.mxu0 0
    %2137 = vmatprep.subr.bf16.mxu0 0
    %2138 = vmatpush2.bf16.msra.mxu0 0
    %2139 = vmatprep.subr.bf16.mxu0 0
    %2140 = vmatpush2.bf16.msra.mxu0 0
    %2141 = vmatprep.subr.bf16.mxu0 0
    %2142 = vmatpush2.bf16.msra.mxu0 0
    %2143 = vmatprep.mubr.bf16.mxu0 0
    %2144 = vmatmul.mubr.bf16.gmra.mxu0 %v1917
    %v2145 = vpop.f32.mrf.mxu0
    %v2146 = vadd.f32 0.0, %v2145
    %v2147 = vpop.f32.mrf.mxu0
    %v2148 = vadd.f32 0.0, %v2147
    %v2149 = vpop.f32.mrf.mxu0
    %v2150 = vpop.f32.mrf.mxu0
    %2151 = vdwg.mxu0
    %2152 = vmatprep.subr.bf16.mxu0 %v2078
    %2153 = vmatpush1.bf16.msra.mxu0 %v2077
    %2154 = vmatprep.subr.bf16.mxu0 %v2074
    %2155 = vmatpush1.bf16.msra.mxu0 %v2073
    %2156 = vmatprep.subr.bf16.mxu0 %v2070
    %2157 = vmatpush1.bf16.msra.mxu0 %v2069
    %2158 = vmatprep.subr.bf16.mxu0 %v2066
    %2159 = vmatpush1.bf16.msra.mxu0 %v2065
    %2160 = vmatprep.subr.bf16.mxu0 %v2062
    %2161 = vmatpush1.bf16.msra.mxu0 %v2061
    %2162 = vmatprep.subr.bf16.mxu0 %v2058
    %2163 = vmatpush1.bf16.msra.mxu0 %v2057
    %2164 = vmatprep.subr.bf16.mxu0 %v2054
    %2165 = vmatpush1.bf16.msra.mxu0 %v2053
    %2166 = vmatprep.subr.bf16.mxu0 %v2050
    %2167 = vmatpush1.bf16.msra.mxu0 %v2049
    %2168 = vmatprep.subr.bf16.mxu0 0
    %2169 = vmatpush2.bf16.msra.mxu0 0
    %2170 = vmatprep.subr.bf16.mxu0 0
    %2171 = vmatpush2.bf16.msra.mxu0 0
    %2172 = vmatprep.subr.bf16.mxu0 0
    %2173 = vmatpush2.bf16.msra.mxu0 0
    %2174 = vmatprep.subr.bf16.mxu0 0
    %2175 = vmatpush2.bf16.msra.mxu0 0
    %2176 = vmatprep.subr.bf16.mxu0 0
    %2177 = vmatpush2.bf16.msra.mxu0 0
    %2178 = vmatprep.subr.bf16.mxu0 0
    %2179 = vmatpush2.bf16.msra.mxu0 0
    %2180 = vmatprep.subr.bf16.mxu0 0
    %2181 = vmatpush2.bf16.msra.mxu0 0
    %2182 = vmatprep.subr.bf16.mxu0 0
    %2183 = vmatpush2.bf16.msra.mxu0 0
    %2184 = vmatprep.mubr.bf16.mxu0 0
    %2185 = vmatmul.mubr.bf16.gmra.mxu0 %v1917
    %v2186 = vpop.f32.mrf.mxu0
    %v2187 = vadd.f32 0.0, %v2186
    %v2188 = vpop.f32.mrf.mxu0
    %v2189 = vadd.f32 0.0, %v2188
    %v2190 = vpop.f32.mrf.mxu0
    %v2191 = vpop.f32.mrf.mxu0
    %2192 = vdwg.mxu0
    %v2193 = vmul.f32 %v2146, 0.5
    %v2194 = vmul.f32 %v2148, 0.5
    %v2195 = vmul.f32 %v2146, 0.044715
    %v2196 = vmul.f32 %v2148, 0.044715
    %v2197 = vmul.f32 %v2195, %v2146
    %v2198 = vmul.f32 %v2196, %v2148
    %v2199 = vmul.f32 %v2197, %v2146
    %v2200 = vmul.f32 %v2198, %v2148
    %v2201 = vadd.f32 %v2146, %v2199
    %v2202 = vadd.f32 %v2148, %v2200
    %v2203 = vmul.f32 %v2201, 0.7978846
    %v2204 = vmul.f32 %v2202, 0.7978846
    %v2205 = vtanh.pop %v2203
    %v2206 = vtanh.pop %v2204
    %v2207 = vadd.f32 %v2205, 1.0
    %v2208 = vadd.f32 %v2206, 1.0
    %v2209 = vmul.f32 %v2193, %v2207
    %v2210 = vmul.f32 %v2194, %v2208
    %v2211 = vmul.f32 %v2209, %v2187
    %v2212 = vmul.f32 %v2210, %v2189
    %v2213 = vpack.c.bf16 %v2211, %v2211
    %v2214 = vpack.c.bf16 %v2212, %v2212
    %s2215 = scalar_lea.vmem [#allocation10], 128
    %v2216 = vld [vmem:[%s2215] sm:$0xf]
    %v2217 = vld [vmem:[%s2215 + $0x4] sm:$0xf]
    %v2218 = vld [vmem:[%s2215 + $0x8] sm:$0xf]
    %v2219 = vld [vmem:[%s2215 + $0xc] sm:$0xf]
    %v2220 = vld [vmem:[%s2215 + $0x10] sm:$0xf]
    %v2221 = vld [vmem:[%s2215 + $0x14] sm:$0xf]
    %v2222 = vld [vmem:[%s2215 + $0x18] sm:$0xf]
    %v2223 = vld [vmem:[%s2215 + $0x1c] sm:$0xf]
    %v2224 = vld [vmem:[%s2215 + $0x20] sm:$0xf]
    %v2225 = vld [vmem:[%s2215 + $0x24] sm:$0xf]
    %v2226 = vld [vmem:[%s2215 + $0x28] sm:$0xf]
    %v2227 = vld [vmem:[%s2215 + $0x2c] sm:$0xf]
    %v2228 = vld [vmem:[%s2215 + $0x30] sm:$0xf]
    %v2229 = vld [vmem:[%s2215 + $0x34] sm:$0xf]
    %v2230 = vld [vmem:[%s2215 + $0x38] sm:$0xf]
    %v2231 = vld [vmem:[%s2215 + $0x3c] sm:$0xf]
    %v2232 = vld [vmem:[%s2215 + $0x40] sm:$0xf]
    %v2233 = vld [vmem:[%s2215 + $0x44] sm:$0xf]
    %v2234 = vld [vmem:[%s2215 + $0x48] sm:$0xf]
    %v2235 = vld [vmem:[%s2215 + $0x4c] sm:$0xf]
    %v2236 = vld [vmem:[%s2215 + $0x50] sm:$0xf]
    %v2237 = vld [vmem:[%s2215 + $0x54] sm:$0xf]
    %v2238 = vld [vmem:[%s2215 + $0x58] sm:$0xf]
    %v2239 = vld [vmem:[%s2215 + $0x5c] sm:$0xf]
    %v2240 = vld [vmem:[%s2215 + $0x60] sm:$0xf]
    %v2241 = vld [vmem:[%s2215 + $0x64] sm:$0xf]
    %v2242 = vld [vmem:[%s2215 + $0x68] sm:$0xf]
    %v2243 = vld [vmem:[%s2215 + $0x6c] sm:$0xf]
    %v2244 = vld [vmem:[%s2215 + $0x70] sm:$0xf]
    %v2245 = vld [vmem:[%s2215 + $0x74] sm:$0xf]
    %v2246 = vld [vmem:[%s2215 + $0x78] sm:$0xf]
    %v2247 = vld [vmem:[%s2215 + $0x7c] sm:$0xf]
    %v2280 = vunpack.c.l.b16 %v2216
    %v2281 = vunpack.c.l.b16 %v2217
    %v2282 = vunpack.c.l.b16 %v2218
    %v2283 = vunpack.c.l.b16 %v2219
    %v2284 = vunpack.c.l.b16 %v2220
    %v2285 = vunpack.c.l.b16 %v2221
    %v2286 = vunpack.c.l.b16 %v2222
    %v2287 = vunpack.c.l.b16 %v2223
    %v2288 = vunpack.c.l.b16 %v2224
    %v2289 = vunpack.c.l.b16 %v2225
    %v2290 = vunpack.c.l.b16 %v2226
    %v2291 = vunpack.c.l.b16 %v2227
    %v2292 = vunpack.c.l.b16 %v2228
    %v2293 = vunpack.c.l.b16 %v2229
    %v2294 = vunpack.c.l.b16 %v2230
    %v2295 = vunpack.c.l.b16 %v2231
    %v2296 = vunpack.c.l.b16 %v2232
    %v2297 = vunpack.c.l.b16 %v2233
    %v2298 = vunpack.c.l.b16 %v2234
    %v2299 = vunpack.c.l.b16 %v2235
    %v2300 = vunpack.c.l.b16 %v2236
    %v2301 = vunpack.c.l.b16 %v2237
    %v2302 = vunpack.c.l.b16 %v2238
    %v2303 = vunpack.c.l.b16 %v2239
    %v2304 = vunpack.c.l.b16 %v2240
    %v2305 = vunpack.c.l.b16 %v2241
    %v2306 = vunpack.c.l.b16 %v2242
    %v2307 = vunpack.c.l.b16 %v2243
    %v2308 = vunpack.c.l.b16 %v2244
    %v2309 = vunpack.c.l.b16 %v2245
    %v2310 = vunpack.c.l.b16 %v2246
    %v2311 = vunpack.c.l.b16 %v2247
    %v2312 = vpack.c.b16 %v2281, %v2280
    %v2313 = vpack.c.b16 %v2283, %v2282
    %v2314 = vpack.c.b16 %v2285, %v2284
    %v2315 = vpack.c.b16 %v2287, %v2286
    %v2316 = vpack.c.b16 %v2289, %v2288
    %v2317 = vpack.c.b16 %v2291, %v2290
    %v2318 = vpack.c.b16 %v2293, %v2292
    %v2319 = vpack.c.b16 %v2295, %v2294
    %v2320 = vpack.c.b16 %v2297, %v2296
    %v2321 = vpack.c.b16 %v2299, %v2298
    %v2322 = vpack.c.b16 %v2301, %v2300
    %v2323 = vpack.c.b16 %v2303, %v2302
    %v2324 = vpack.c.b16 %v2305, %v2304
    %v2325 = vpack.c.b16 %v2307, %v2306
    %v2326 = vpack.c.b16 %v2309, %v2308
    %v2327 = vpack.c.b16 %v2311, %v2310
    %2344 = vmatprep.subr.bf16.mxu0 0
    %2345 = vmatpush1.bf16.msra.mxu0 %v2319
    %2346 = vmatprep.subr.bf16.mxu0 0
    %2347 = vmatpush1.bf16.msra.mxu0 %v2318
    %2348 = vmatprep.subr.bf16.mxu0 0
    %2349 = vmatpush1.bf16.msra.mxu0 %v2317
    %2350 = vmatprep.subr.bf16.mxu0 0
    %2351 = vmatpush1.bf16.msra.mxu0 %v2316
    %2352 = vmatprep.subr.bf16.mxu0 0
    %2353 = vmatpush1.bf16.msra.mxu0 %v2315
    %2354 = vmatprep.subr.bf16.mxu0 0
    %2355 = vmatpush1.bf16.msra.mxu0 %v2314
    %2356 = vmatprep.subr.bf16.mxu0 0
    %2357 = vmatpush1.bf16.msra.mxu0 %v2313
    %2358 = vmatprep.subr.bf16.mxu0 0
    %2359 = vmatpush1.bf16.msra.mxu0 %v2312
    %2360 = vmatprep.subr.bf16.mxu0 0
    %2361 = vmatpush2.bf16.msra.mxu0 %v2327
    %2362 = vmatprep.subr.bf16.mxu0 0
    %2363 = vmatpush2.bf16.msra.mxu0 %v2326
    %2364 = vmatprep.subr.bf16.mxu0 0
    %2365 = vmatpush2.bf16.msra.mxu0 %v2325
    %2366 = vmatprep.subr.bf16.mxu0 0
    %2367 = vmatpush2.bf16.msra.mxu0 %v2324
    %2368 = vmatprep.subr.bf16.mxu0 0
    %2369 = vmatpush2.bf16.msra.mxu0 %v2323
    %2370 = vmatprep.subr.bf16.mxu0 0
    %2371 = vmatpush2.bf16.msra.mxu0 %v2322
    %2372 = vmatprep.subr.bf16.mxu0 0
    %2373 = vmatpush2.bf16.msra.mxu0 %v2321
    %2374 = vmatprep.subr.bf16.mxu0 0
    %2375 = vmatpush2.bf16.msra.mxu0 %v2320
    %2376 = vmatprep.mubr.bf16.mxu0 %v2214
    %2377 = vmatmul.mubr.bf16.gmra.mxu0 %v2213
    %v2378 = vpop.f32.mrf.mxu0
    %v2379 = vadd.f32 %v1899, %v2378
    %v2380 = vpop.f32.mrf.mxu0
    %v2381 = vpop.f32.mrf.mxu0
    %v2382 = vpop.f32.mrf.mxu0
    %2383 = vdwg.mxu0
    %v2384 = vld [vmem:[%s7 + $0x4] sm:$0x1]
    %v2385 = vmul.f32 %v2379, %v2379
    %2386 = vadd.xlane.f32.xlu0 %v2385
    %v2387 = vpop.xlane.xlu0 %2386
    %v2388 = vmul.f32 %v2387, %v290
    %v2389 = vadd.f32 %v2388, 1e-06
    %v2390 = vrsqrt.pop %v2389
    %v2391 = vmul.f32 %v2379, %v2390
    %v2392 = vadd.f32 %v2384, 1.0
    %v2393 = vlaneseq
    %v2394 = vshrl.u32 %v2393, 7
    %v2395 = vsub.s32 0, %v2394
    %v2396 = vrot.slane %v2392, %v2395
    %v2397 = vmul.f32 %v2391, %v2396
    %2398 = vst [vmem:[#allocation11] sm:$0xff] %v2397
    // Predicated region
    $region54: #{gemma_forward.1} parent=1 // pred_check
      _
    $region55: #{gemma_forward.1} parent=1 // pred_check_branch
      %2400 = sbr.rel (0) target = $region57
    $region56: #{gemma_forward.1} parent=1 // pred_region
      %s2402 = ssub.s32 128, 128
      %2403 = vsyncadd [#allocation4], %s2402
      %s2405 = sshll.u32 [#allocation11], 4
      %s2406 = int_to_ptr.vmem [resolvable:$true] %s2405
      %2408 = dma.vmem_to_hbm [thread:$0]  %s2406, 128, %s8, [#allocation4]
    $region57: #{gemma_forward.1} parent=1 // pred_fallthru
      _
    // Predicated region
    $region58: #{gemma_forward.1} parent=1 // pred_check
      _
    $region59: #{gemma_forward.1} parent=1 // pred_check_branch
      %2410 = sbr.rel (0) target = $region61
    $region60: #{gemma_forward.1} parent=1 // pred_region
      %2411 = dma.done [#allocation4], 128
    $region61: #{gemma_forward.1} parent=1 // pred_fallthru
      _
    %2412 = vsyncpa [#allocation3], 1
    %2413 = vsyncpa [#allocation6], 1
    %2414 = vsyncpa [#allocation9], 1
    %2415 = vsyncpa [#allocation4], 1

</llo_original>
